<compile_context>
chip_gen: v7x
topology: tpu7x:2x2x1
jax: 0.10.0
libtpu: 0.0.40
codegen_flags: <defaults>
</compile_context>

<pallas_src>
import jax
import jax.numpy as jnp
from jax.experimental import pallas as pl
from jax.experimental.pallas import tpu as pltpu


def _round_up(n, m):
    return ((n + m - 1) // m) * m


def encoder_kernel(x_ref, w1_ref, b1_ref, w2_ref, b2_ref, w3_ref, b3_ref, o_ref):
    """Fused 3-layer MLP forward on one batch tile.

    Matmuls run on the MXU with bf16 inputs / f32 accumulation; bias add and
    ReLU stay in f32 on the VPU (v5e has no bf16 VPU path).
    """
    w1 = w1_ref[...]
    w2 = w2_ref[...]
    w3 = w3_ref[...]
    mm_dtype = w1.dtype                      # bf16 (or f32 if caller chose so)

    x = x_ref[...].astype(mm_dtype)

    # linear1 + ReLU   (dropout1 = identity in eval mode)
    h = jnp.dot(x, w1, preferred_element_type=jnp.float32) + b1_ref[...]
    h = jnp.maximum(h, 0.0)

    # linear2 + ReLU   (dropout2 = identity in eval mode)
    h = jnp.dot(h.astype(mm_dtype), w2, preferred_element_type=jnp.float32) + b2_ref[...]
    h = jnp.maximum(h, 0.0)

    # linear3 + ReLU
    h = jnp.dot(h.astype(mm_dtype), w3, preferred_element_type=jnp.float32) + b3_ref[...]
    h = jnp.maximum(h, 0.0)

    o_ref[...] = h.astype(o_ref.dtype)


def prepare_params(params, *, lane=128, matmul_dtype=jnp.bfloat16):
    """One-time HBM-side preparation of the weights.

    * Pads every feature dim up to a multiple of `lane` (=128) so the output
      store is lane-dense and the MXU sees full column blocks.
    * Casts weights to `matmul_dtype` (bf16): halves HBM weight traffic and
      VMEM residency, doubles MXU rate on v6e/v7x. Biases stay f32.

    Zero padding is exact: padded input columns hit zero weight rows, padded
    hidden units get zero bias -> ReLU(0) = 0 -> contribute nothing downstream,
    and padded latent columns are sliced off in the wrapper.
    """
    def pad2(a, rows, cols):
        return jnp.pad(a, ((0, rows - a.shape[0]), (0, cols - a.shape[1])))

    din, hid = params["w1"].shape
    lat = params["w3"].shape[1]
    din_p, hid_p, lat_p = (_round_up(d, lane) for d in (din, hid, lat))

    return dict(
        w1=pad2(params["w1"], din_p, hid_p).astype(matmul_dtype),
        b1=pad2(params["b1"], 1, hid_p).astype(jnp.float32),
        w2=pad2(params["w2"], hid_p, hid_p).astype(matmul_dtype),
        b2=pad2(params["b2"], 1, hid_p).astype(jnp.float32),
        w3=pad2(params["w3"], hid_p, lat_p).astype(matmul_dtype),
        b3=pad2(params["b3"], 1, lat_p).astype(jnp.float32),
    )


def encoder_forward(x, prep, latent_dim, *, tile_b=None):
    """Run the fused encoder kernel.

    x:    (B, input_dim) float32
    prep: output of prepare_params() — padded, bf16 weights + f32 biases
    latent_dim: original (unpadded) output width
    """
    B, din = x.shape
    din_p, hid_p = prep["w1"].shape
    lat_p = prep["w3"].shape[1]
    assert din <= din_p, "input feature dim larger than prepared params"

    # --- batch tiling -------------------------------------------------------
    # Default tile: up to 512 rows (sweet spot for DMA/compute overlap), always
    # a multiple of 8 (f32 sublane). Remainder batches are zero-padded.
    if tile_b is None:
        tile_b = min(512, _round_up(B, 8))
    assert tile_b % 8 == 0, "tile_b must be a multiple of 8 (f32 sublane)"
    B_pad = _round_up(B, tile_b)
    grid = (B_pad // tile_b,)

    x_p = x
    if (B_pad, din_p) != (B, din):
        x_p = jnp.pad(x, ((0, B_pad - B), (0, din_p - din)))

    # --- cost estimate (lets XLA overlap surrounding ops with the kernel) ----
    flops = 2 * B_pad * (din_p * hid_p + hid_p * hid_p + hid_p * lat_p)
    bytes_accessed = (
        x_p.size * x_p.dtype.itemsize
        + sum(prep[k].size * prep[k].dtype.itemsize for k in prep)
        + B_pad * lat_p * 4
    )
    cost = pl.CostEstimate(
        flops=int(flops), transcendentals=0, bytes_accessed=int(bytes_accessed)
    )

    # --- VMEM budget ---------------------------------------------------------
    # weights/biases (worst case: double-buffered) + double-buffered x/out
    # tiles + f32 activation temporaries. Cap at 64 MiB so the same request is
    # valid on v7x (64 MiB physical VMEM per TensorCore).
    weight_bytes = sum(prep[k].size * prep[k].dtype.itemsize for k in prep)
    io_bytes = 2 * tile_b * (din_p + lat_p) * 4 * 2      # 2-deep buffering
    act_bytes = 4 * tile_b * hid_p * 4                   # f32 temporaries
    vmem_needed = 2 * weight_bytes + io_bytes + act_bytes
    vmem_limit = int(min(max(2 * vmem_needed, 32 * 2**20), 64 * 2**20))

    compiler_params = pltpu.CompilerParams(
        dimension_semantics=("parallel",),   # batch tiles shard across cores (v7x)
        vmem_limit_bytes=vmem_limit,
    )

    def _call(single_buffer_weights):
        def inv_spec(shape):
            # Grid-invariant blocks: weights/biases stay resident across all
            # batch tiles. Single-buffer them (halves weight VMEM) when the
            # installed JAX supports top-level pipeline_mode.
            if single_buffer_weights:
                return pl.BlockSpec(
                    shape, lambda i: (0, 0), pipeline_mode=pl.Buffered(1)
                )
            return pl.BlockSpec(shape, lambda i: (0, 0))

        in_specs = [
            pl.BlockSpec((tile_b, din_p), lambda i: (i, 0)),   # x (pipelined)
            inv_spec((din_p, hid_p)),                          # w1
            inv_spec((1, hid_p)),                              # b1
            inv_spec((hid_p, hid_p)),                          # w2
            inv_spec((1, hid_p)),                              # b2
            inv_spec((hid_p, lat_p)),                          # w3
            inv_spec((1, lat_p)),                              # b3
        ]
        out_specs = pl.BlockSpec((tile_b, lat_p), lambda i: (i, 0))

        return pl.pallas_call(
            encoder_kernel,
            out_shape=jax.ShapeDtypeStruct((B_pad, lat_p), x.dtype),
            grid_spec=pltpu.PrefetchScalarGridSpec(
                num_scalar_prefetch=0,
                grid=grid,
                in_specs=in_specs,
                out_specs=out_specs,
            ),
            compiler_params=compiler_params,
            cost_estimate=cost,
        )(x_p, prep["w1"], prep["b1"], prep["w2"], prep["b2"],
          prep["w3"], prep["b3"])

    try:
        out_p = _call(single_buffer_weights=True)
    except Exception:
        # Fallback for JAX versions without top-level BlockSpec pipeline_mode:
        # identical results, weights just keep the default 2-deep buffering.
        out_p = _call(single_buffer_weights=False)

    # Strip batch / lane padding.
    return out_p[:B, :latent_dim]


def init_params(key, input_dim, hidden_dim, latent_dim):
    """Deterministic init mimicking nn.Linear's U(-1/sqrt(fan_in), 1/sqrt(fan_in))."""
    ks = jax.random.split(key, 6)

    def linear(kw, kb, fan_in, fan_out):
        bound = 1.0 / jnp.sqrt(fan_in)
        w = jax.random.uniform(kw, (fan_in, fan_out), jnp.float32, -bound, bound)
        b = jax.random.uniform(kb, (1, fan_out), jnp.float32, -bound, bound)
        return w, b

    w1, b1 = linear(ks[0], ks[1], input_dim, hidden_dim)
    w2, b2 = linear(ks[2], ks[3], hidden_dim, hidden_dim)
    w3, b3 = linear(ks[4], ks[5], hidden_dim, latent_dim)
    return dict(w1=w1, b1=b1, w2=w2, b2=b2, w3=w3, b3=b3)


def encoder_reference_f32(x, p):
    """Pure-f32 JAX reference (eval-mode dropout) — module semantics."""
    h = jnp.maximum(x @ p["w1"] + p["b1"], 0.0)
    h = jnp.maximum(h @ p["w2"] + p["b2"], 0.0)
    h = jnp.maximum(h @ p["w3"] + p["b3"], 0.0)
    return h


def encoder_reference_bf16(x, p, mm_dtype=jnp.bfloat16):
    """Reference that mirrors the kernel's numerics (bf16 MXU inputs, f32 acc)."""
    def layer(h, w, b):
        acc = jnp.dot(h.astype(mm_dtype), w.astype(mm_dtype),
                      preferred_element_type=jnp.float32) + b
        return jnp.maximum(acc, 0.0)

    h = layer(x, p["w1"], p["b1"])
    h = layer(h, p["w2"], p["b2"])
    h = layer(h, p["w3"], p["b3"])
    return h


if __name__ == "__main__":
    key = jax.random.PRNGKey(0)
    k_x, k_x2, k_p = jax.random.split(key, 3)

    B, input_dim, hidden_dim, latent_dim = 64, 32, 32, 16

    x = jax.random.normal(k_x, (B, input_dim), dtype=jnp.float32)
    params = init_params(k_p, input_dim, hidden_dim, latent_dim)
    prep = prepare_params(params)

    # tile_b=16 -> grid of 4 batch tiles: exercises the software pipeline and
    # lets the 'parallel' batch axis shard across v7x's two TensorCores.
    out = encoder_forward(x, prep, latent_dim, tile_b=16)
    out = jax.block_until_ready(out)
    assert out.shape == (B, latent_dim)

    # Tight check against a numerics-matched (bf16-input) reference.
    ref_matched = encoder_reference_bf16(x, params)
    assert jnp.allclose(out, ref_matched, atol=2e-3, rtol=2e-3), float(
        jnp.max(jnp.abs(out - ref_matched)))

    # Loose sanity check against the pure-f32 module semantics.
    ref_f32 = encoder_reference_f32(x, params)
    assert jnp.allclose(out, ref_f32, atol=5e-2, rtol=5e-2)

    # Ragged batch: B=10 is not a multiple of tile_b=8 -> last tile is padded.
    x2 = jax.random.normal(k_x2, (10, input_dim), dtype=jnp.float32)
    out2 = jax.block_until_ready(encoder_forward(x2, prep, latent_dim, tile_b=8))
    assert out2.shape == (10, latent_dim)
    assert jnp.allclose(out2, encoder_reference_bf16(x2, params),
                        atol=2e-3, rtol=2e-3)

    print("KERNEL_OK")
</pallas_src>

<mosaic_0001>
module attributes {stable_mosaic.version = 11 : i64} {
  func.func @encoder_kernel(%arg0: i32, %arg1: memref<16x128xf32, #tpu.memory_space<vmem>>, %arg2: memref<128x128xbf16, #tpu.memory_space<vmem>>, %arg3: memref<1x128xf32, #tpu.memory_space<vmem>>, %arg4: memref<128x128xbf16, #tpu.memory_space<vmem>>, %arg5: memref<1x128xf32, #tpu.memory_space<vmem>>, %arg6: memref<128x128xbf16, #tpu.memory_space<vmem>>, %arg7: memref<1x128xf32, #tpu.memory_space<vmem>>, %arg8: memref<16x128xf32, #tpu.memory_space<vmem>>) attributes {dimension_semantics = [#tpu.dimension_semantics<parallel>], iteration_bounds = array<i64: 4>, scalar_prefetch = 0 : i64, scratch_operands = 0 : i64, tpu.core_type = #tpu.core_type<tc>, window_params = [{transform_indices = @transform_0, window_bounds = array<i64: 16, 128>}, {pipeline_mode = #tpu.pipeline_mode<synchronous>, transform_indices = @transform_1, window_bounds = array<i64: 128, 128>}, {pipeline_mode = #tpu.pipeline_mode<synchronous>, transform_indices = @transform_2, window_bounds = array<i64: 1, 128>}, {pipeline_mode = #tpu.pipeline_mode<synchronous>, transform_indices = @transform_3, window_bounds = array<i64: 128, 128>}, {pipeline_mode = #tpu.pipeline_mode<synchronous>, transform_indices = @transform_4, window_bounds = array<i64: 1, 128>}, {pipeline_mode = #tpu.pipeline_mode<synchronous>, transform_indices = @transform_5, window_bounds = array<i64: 128, 128>}, {pipeline_mode = #tpu.pipeline_mode<synchronous>, transform_indices = @transform_6, window_bounds = array<i64: 1, 128>}, {transform_indices = @transform_7, window_bounds = array<i64: 16, 128>}]} {
    %c0 = arith.constant 0 : index
    %c0_0 = arith.constant 0 : index
    %0 = vector.load %arg2[%c0, %c0_0] : memref<128x128xbf16, #tpu.memory_space<vmem>>, vector<128x128xbf16>
    %c0_1 = arith.constant 0 : index
    %c0_2 = arith.constant 0 : index
    %1 = vector.load %arg4[%c0_1, %c0_2] : memref<128x128xbf16, #tpu.memory_space<vmem>>, vector<128x128xbf16>
    %c0_3 = arith.constant 0 : index
    %c0_4 = arith.constant 0 : index
    %2 = vector.load %arg6[%c0_3, %c0_4] : memref<128x128xbf16, #tpu.memory_space<vmem>>, vector<128x128xbf16>
    %c0_5 = arith.constant 0 : index
    %c0_6 = arith.constant 0 : index
    %3 = vector.load %arg1[%c0_5, %c0_6] : memref<16x128xf32, #tpu.memory_space<vmem>>, vector<16x128xf32>
    %4 = arith.truncf %3 : vector<16x128xf32> to vector<16x128xbf16>
    %cst = arith.constant dense<0.000000e+00> : vector<16x128xf32>
    %5 = tpu.matmul %4, %0, %cst {dimension_numbers = #tpu.dot_dimension_numbers<[1], [0], [0], [1], [0, 0, 1, 1], [], []>} : vector<16x128xbf16>, vector<128x128xbf16>, vector<16x128xf32> -> vector<16x128xf32>
    %c0_7 = arith.constant 0 : index
    %c0_8 = arith.constant 0 : index
    %6 = vector.load %arg3[%c0_7, %c0_8] : memref<1x128xf32, #tpu.memory_space<vmem>>, vector<1x128xf32>
    %7 = vector.broadcast %6 : vector<1x128xf32> to vector<16x128xf32>
    %8 = arith.addf %5, %7 : vector<16x128xf32>
    %cst_9 = arith.constant 0.000000e+00 : f32
    %9 = vector.broadcast %cst_9 : f32 to vector<16x128xf32>
    %10 = arith.maximumf %8, %9 : vector<16x128xf32>
    %11 = arith.truncf %10 : vector<16x128xf32> to vector<16x128xbf16>
    %cst_10 = arith.constant dense<0.000000e+00> : vector<16x128xf32>
    %12 = tpu.matmul %11, %1, %cst_10 {dimension_numbers = #tpu.dot_dimension_numbers<[1], [0], [0], [1], [0, 0, 1, 1], [], []>} : vector<16x128xbf16>, vector<128x128xbf16>, vector<16x128xf32> -> vector<16x128xf32>
    %c0_11 = arith.constant 0 : index
    %c0_12 = arith.constant 0 : index
    %13 = vector.load %arg5[%c0_11, %c0_12] : memref<1x128xf32, #tpu.memory_space<vmem>>, vector<1x128xf32>
    %14 = vector.broadcast %13 : vector<1x128xf32> to vector<16x128xf32>
    %15 = arith.addf %12, %14 : vector<16x128xf32>
    %cst_13 = arith.constant 0.000000e+00 : f32
    %16 = vector.broadcast %cst_13 : f32 to vector<16x128xf32>
    %17 = arith.maximumf %15, %16 : vector<16x128xf32>
    %18 = arith.truncf %17 : vector<16x128xf32> to vector<16x128xbf16>
    %cst_14 = arith.constant dense<0.000000e+00> : vector<16x128xf32>
    %19 = tpu.matmul %18, %2, %cst_14 {dimension_numbers = #tpu.dot_dimension_numbers<[1], [0], [0], [1], [0, 0, 1, 1], [], []>} : vector<16x128xbf16>, vector<128x128xbf16>, vector<16x128xf32> -> vector<16x128xf32>
    %c0_15 = arith.constant 0 : index
    %c0_16 = arith.constant 0 : index
    %20 = vector.load %arg7[%c0_15, %c0_16] : memref<1x128xf32, #tpu.memory_space<vmem>>, vector<1x128xf32>
    %21 = vector.broadcast %20 : vector<1x128xf32> to vector<16x128xf32>
    %22 = arith.addf %19, %21 : vector<16x128xf32>
    %cst_17 = arith.constant 0.000000e+00 : f32
    %23 = vector.broadcast %cst_17 : f32 to vector<16x128xf32>
    %24 = arith.maximumf %22, %23 : vector<16x128xf32>
    %c0_18 = arith.constant 0 : index
    %c0_19 = arith.constant 0 : index
    %25 = vector.load %arg8[%c0_18, %c0_19] : memref<16x128xf32, #tpu.memory_space<vmem>>, vector<16x128xf32>
    tpu.vector_store %arg8[%c0_18, %c0_19], %24 {strides = array<i32>} : memref<16x128xf32, #tpu.memory_space<vmem>>, vector<16x128xf32>,
    return
  }
  func.func @transform_0(%arg0: i32) -> (i32, i32) {
    %c0_i32 = arith.constant 0 : i32
    %c0_i32_0 = arith.constant 0 : i32
    return %arg0, %c0_i32 : i32, i32
  }
  func.func @transform_1(%arg0: i32) -> (i32, i32) {
    %c0_i32 = arith.constant 0 : i32
    %c0_i32_0 = arith.constant 0 : i32
    %c0_i32_1 = arith.constant 0 : i32
    return %c0_i32, %c0_i32_0 : i32, i32
  }
  func.func @transform_2(%arg0: i32) -> (i32, i32) {
    %c0_i32 = arith.constant 0 : i32
    %c0_i32_0 = arith.constant 0 : i32
    %c0_i32_1 = arith.constant 0 : i32
    return %c0_i32, %c0_i32_0 : i32, i32
  }
  func.func @transform_3(%arg0: i32) -> (i32, i32) {
    %c0_i32 = arith.constant 0 : i32
    %c0_i32_0 = arith.constant 0 : i32
    %c0_i32_1 = arith.constant 0 : i32
    return %c0_i32, %c0_i32_0 : i32, i32
  }
  func.func @transform_4(%arg0: i32) -> (i32, i32) {
    %c0_i32 = arith.constant 0 : i32
    %c0_i32_0 = arith.constant 0 : i32
    %c0_i32_1 = arith.constant 0 : i32
    return %c0_i32, %c0_i32_0 : i32, i32
  }
  func.func @transform_5(%arg0: i32) -> (i32, i32) {
    %c0_i32 = arith.constant 0 : i32
    %c0_i32_0 = arith.constant 0 : i32
    %c0_i32_1 = arith.constant 0 : i32
    return %c0_i32, %c0_i32_0 : i32, i32
  }
  func.func @transform_6(%arg0: i32) -> (i32, i32) {
    %c0_i32 = arith.constant 0 : i32
    %c0_i32_0 = arith.constant 0 : i32
    %c0_i32_1 = arith.constant 0 : i32
    return %c0_i32, %c0_i32_0 : i32, i32
  }
  func.func @transform_7(%arg0: i32) -> (i32, i32) {
    %c0_i32 = arith.constant 0 : i32
    %c0_i32_0 = arith.constant 0 : i32
    return %arg0, %c0_i32 : i32, i32
  }
}

module attributes {stable_mosaic.version = 11 : i64} {
  func.func @encoder_kernel(%arg0: i32, %arg1: memref<16x128xf32, #tpu.memory_space<vmem>>, %arg2: memref<128x128xbf16, #tpu.memory_space<vmem>>, %arg3: memref<1x128xf32, #tpu.memory_space<vmem>>, %arg4: memref<128x128xbf16, #tpu.memory_space<vmem>>, %arg5: memref<1x128xf32, #tpu.memory_space<vmem>>, %arg6: memref<128x128xbf16, #tpu.memory_space<vmem>>, %arg7: memref<1x128xf32, #tpu.memory_space<vmem>>, %arg8: memref<16x128xf32, #tpu.memory_space<vmem>>) attributes {dimension_semantics = [#tpu.dimension_semantics<parallel>], iteration_bounds = array<i64: 4>, scalar_prefetch = 0 : i64, scratch_operands = 0 : i64, tpu.core_type = #tpu.core_type<tc>, window_params = [{transform_indices = @transform_0, window_bounds = array<i64: 16, 128>}, {pipeline_mode = #tpu.pipeline_mode<synchronous>, transform_indices = @transform_1, window_bounds = array<i64: 128, 128>}, {pipeline_mode = #tpu.pipeline_mode<synchronous>, transform_indices = @transform_2, window_bounds = array<i64: 1, 128>}, {pipeline_mode = #tpu.pipeline_mode<synchronous>, transform_indices = @transform_3, window_bounds = array<i64: 128, 128>}, {pipeline_mode = #tpu.pipeline_mode<synchronous>, transform_indices = @transform_4, window_bounds = array<i64: 1, 128>}, {pipeline_mode = #tpu.pipeline_mode<synchronous>, transform_indices = @transform_5, window_bounds = array<i64: 128, 128>}, {pipeline_mode = #tpu.pipeline_mode<synchronous>, transform_indices = @transform_6, window_bounds = array<i64: 1, 128>}, {transform_indices = @transform_7, window_bounds = array<i64: 16, 128>}]} {
    %c0 = arith.constant 0 : index
    %c0_0 = arith.constant 0 : index
    %0 = vector.load %arg2[%c0, %c0_0] : memref<128x128xbf16, #tpu.memory_space<vmem>>, vector<128x128xbf16>
    %c0_1 = arith.constant 0 : index
    %c0_2 = arith.constant 0 : index
    %1 = vector.load %arg4[%c0_1, %c0_2] : memref<128x128xbf16, #tpu.memory_space<vmem>>, vector<128x128xbf16>
    %c0_3 = arith.constant 0 : index
    %c0_4 = arith.constant 0 : index
    %2 = vector.load %arg6[%c0_3, %c0_4] : memref<128x128xbf16, #tpu.memory_space<vmem>>, vector<128x128xbf16>
    %c0_5 = arith.constant 0 : index
    %c0_6 = arith.constant 0 : index
    %3 = vector.load %arg1[%c0_5, %c0_6] : memref<16x128xf32, #tpu.memory_space<vmem>>, vector<16x128xf32>
    %4 = arith.truncf %3 : vector<16x128xf32> to vector<16x128xbf16>
    %cst = arith.constant dense<0.000000e+00> : vector<16x128xf32>
    %5 = tpu.matmul %4, %0, %cst {dimension_numbers = #tpu.dot_dimension_numbers<[1], [0], [0], [1], [0, 0, 1, 1], [], []>} : vector<16x128xbf16>, vector<128x128xbf16>, vector<16x128xf32> -> vector<16x128xf32>
    %c0_7 = arith.constant 0 : index
    %c0_8 = arith.constant 0 : index
    %6 = vector.load %arg3[%c0_7, %c0_8] : memref<1x128xf32, #tpu.memory_space<vmem>>, vector<1x128xf32>
    %7 = vector.broadcast %6 : vector<1x128xf32> to vector<16x128xf32>
    %8 = arith.addf %5, %7 : vector<16x128xf32>
    %cst_9 = arith.constant 0.000000e+00 : f32
    %9 = vector.broadcast %cst_9 : f32 to vector<16x128xf32>
    %10 = arith.maximumf %8, %9 : vector<16x128xf32>
    %11 = arith.truncf %10 : vector<16x128xf32> to vector<16x128xbf16>
    %cst_10 = arith.constant dense<0.000000e+00> : vector<16x128xf32>
    %12 = tpu.matmul %11, %1, %cst_10 {dimension_numbers = #tpu.dot_dimension_numbers<[1], [0], [0], [1], [0, 0, 1, 1], [], []>} : vector<16x128xbf16>, vector<128x128xbf16>, vector<16x128xf32> -> vector<16x128xf32>
    %c0_11 = arith.constant 0 : index
    %c0_12 = arith.constant 0 : index
    %13 = vector.load %arg5[%c0_11, %c0_12] : memref<1x128xf32, #tpu.memory_space<vmem>>, vector<1x128xf32>
    %14 = vector.broadcast %13 : vector<1x128xf32> to vector<16x128xf32>
    %15 = arith.addf %12, %14 : vector<16x128xf32>
    %cst_13 = arith.constant 0.000000e+00 : f32
    %16 = vector.broadcast %cst_13 : f32 to vector<16x128xf32>
    %17 = arith.maximumf %15, %16 : vector<16x128xf32>
    %18 = arith.truncf %17 : vector<16x128xf32> to vector<16x128xbf16>
    %cst_14 = arith.constant dense<0.000000e+00> : vector<16x128xf32>
    %19 = tpu.matmul %18, %2, %cst_14 {dimension_numbers = #tpu.dot_dimension_numbers<[1], [0], [0], [1], [0, 0, 1, 1], [], []>} : vector<16x128xbf16>, vector<128x128xbf16>, vector<16x128xf32> -> vector<16x128xf32>
    %c0_15 = arith.constant 0 : index
    %c0_16 = arith.constant 0 : index
    %20 = vector.load %arg7[%c0_15, %c0_16] : memref<1x128xf32, #tpu.memory_space<vmem>>, vector<1x128xf32>
    %21 = vector.broadcast %20 : vector<1x128xf32> to vector<16x128xf32>
    %22 = arith.addf %19, %21 : vector<16x128xf32>
    %cst_17 = arith.constant 0.000000e+00 : f32
    %23 = vector.broadcast %cst_17 : f32 to vector<16x128xf32>
    %24 = arith.maximumf %22, %23 : vector<16x128xf32>
    %c0_18 = arith.constant 0 : index
    %c0_19 = arith.constant 0 : index
    %25 = vector.load %arg8[%c0_18, %c0_19] : memref<16x128xf32, #tpu.memory_space<vmem>>, vector<16x128xf32>
    tpu.vector_store %arg8[%c0_18, %c0_19], %24 {strides = array<i32>} : memref<16x128xf32, #tpu.memory_space<vmem>>, vector<16x128xf32>,
    return
  }
  func.func @transform_0(%arg0: i32) -> (i32, i32) {
    %c0_i32 = arith.constant 0 : i32
    %c0_i32_0 = arith.constant 0 : i32
    return %arg0, %c0_i32 : i32, i32
  }
  func.func @transform_1(%arg0: i32) -> (i32, i32) {
    %c0_i32 = arith.constant 0 : i32
    %c0_i32_0 = arith.constant 0 : i32
    %c0_i32_1 = arith.constant 0 : i32
    return %c0_i32, %c0_i32_0 : i32, i32
  }
  func.func @transform_2(%arg0: i32) -> (i32, i32) {
    %c0_i32 = arith.constant 0 : i32
    %c0_i32_0 = arith.constant 0 : i32
    %c0_i32_1 = arith.constant 0 : i32
    return %c0_i32, %c0_i32_0 : i32, i32
  }
  func.func @transform_3(%arg0: i32) -> (i32, i32) {
    %c0_i32 = arith.constant 0 : i32
    %c0_i32_0 = arith.constant 0 : i32
    %c0_i32_1 = arith.constant 0 : i32
    return %c0_i32, %c0_i32_0 : i32, i32
  }
  func.func @transform_4(%arg0: i32) -> (i32, i32) {
    %c0_i32 = arith.constant 0 : i32
    %c0_i32_0 = arith.constant 0 : i32
    %c0_i32_1 = arith.constant 0 : i32
    return %c0_i32, %c0_i32_0 : i32, i32
  }
  func.func @transform_5(%arg0: i32) -> (i32, i32) {
    %c0_i32 = arith.constant 0 : i32
    %c0_i32_0 = arith.constant 0 : i32
    %c0_i32_1 = arith.constant 0 : i32
    return %c0_i32, %c0_i32_0 : i32, i32
  }
  func.func @transform_6(%arg0: i32) -> (i32, i32) {
    %c0_i32 = arith.constant 0 : i32
    %c0_i32_0 = arith.constant 0 : i32
    %c0_i32_1 = arith.constant 0 : i32
    return %c0_i32, %c0_i32_0 : i32, i32
  }
  func.func @transform_7(%arg0: i32) -> (i32, i32) {
    %c0_i32 = arith.constant 0 : i32
    %c0_i32_0 = arith.constant 0 : i32
    return %arg0, %c0_i32 : i32, i32
  }
}

</mosaic_0001>

<llo_original>
// kernel: tpu_custom_call.1
$region0: #{tpu_custom_call.1}
  #allocation0 [shape = 'u32[]', space=smem, size = 0x4, offset = 0x4, fixed_abs, tag = 'smem constant byte address 0x4 - core index']
  #allocation1 [shape = 'u32[144,128]{1,0:T(1,128)}', space=vmem, size = 0x12000, scoped, tag = 'internal scratch']
  %s0 = inlined_call_operand.hbm [shape: f32[64,128], index: 0, kind: input, shape index: {}]
  %s1 = inlined_call_operand.hbm [shape: bf16[128,128], index: 1, kind: input, shape index: {}]
  %s2 = inlined_call_operand.vmem [shape: f32[1,128], index: 2, kind: input, shape index: {}]
  %s3 = inlined_call_operand.hbm [shape: bf16[128,128], index: 3, kind: input, shape index: {}]
  %s4 = inlined_call_operand.vmem [shape: f32[1,128], index: 4, kind: input, shape index: {}]
  %s5 = inlined_call_operand.hbm [shape: bf16[128,128], index: 5, kind: input, shape index: {}]
  %s6 = inlined_call_operand.vmem [shape: f32[1,128], index: 6, kind: input, shape index: {}]
  %s7 = inlined_call_operand.hbm [shape: f32[64,128], index: 7, kind: output, shape index: {}]
  %s8 = sld [smem:[#allocation0]]
  $region77: #{tpu_custom_call.1} parent=0
    _
  %s10 = ssub.s32 1, %s8
  %s11 = scalar_select 0, %s10, %s8
  $region1: #{tpu_custom_call.1} parent=0
    #allocation2 [shape = 'u8[16384]{0}', space=vmem, size = 0x4000, scoped, tag = 'input window, operand 0']
    #allocation3 [shape = 's32[2]{0}', space=sflag, size = 0x8, scoped, tag = 'scoped memory for tpu_custom_call.1']
    #allocation4 [shape = 's32[2]{0}', space=sflag, size = 0x8, scoped, tag = 'scoped memory for tpu_custom_call.1']
    #allocation5 [shape = 'u8[32768]{0}', space=vmem, size = 0x8000, scoped, tag = 'input window, operand 1, single buffered']
    #allocation6 [shape = 's32[1]{0}', space=sflag, size = 0x4, scoped, tag = 'scoped memory for tpu_custom_call.1']
    #allocation7 [shape = 'u8[32768]{0}', space=vmem, size = 0x8000, scoped, tag = 'input window, operand 3, single buffered']
    #allocation8 [shape = 'u8[32768]{0}', space=vmem, size = 0x8000, scoped, tag = 'input window, operand 5, single buffered']
    #allocation9 [shape = 's32[1]{0}', space=sflag, size = 0x4, scoped, tag = 'scoped memory for tpu_custom_call.1']
    #allocation10 [shape = 'u8[16384]{0}', space=vmem, size = 0x4000, scoped, tag = 'output window, operand 0']
    %12 = vsyncpa [#allocation3], 0
    %s13 = scalar_lea.sflag [#allocation3], 1
    %14 = vsyncpa %s13, 0
    %15 = vsyncpa [#allocation6], 0
    %16 = vsyncpa [#allocation9], 0
    %17 = vsyncpa [#allocation4], 0
    %s18 = scalar_lea.sflag [#allocation4], 1
    %19 = vsyncpa %s18, 0
    loop: start=0, step=1, limit=6
    $region2: #{tpu_custom_call.1} parent=1 // loop_pre_header
      _
    $region3: #{tpu_custom_call.1} parent=1 // loop_header
      %s21 = sphi 0, %s25
      %p22 = scmp.ge.s32.totalorder %s21, 6
      %s31 = sphi 0, %s33
      %s34 = sphi 0, %s31
      %s35 = sphi 0, %s34
      %s51 = sphi 0, %s35
      %s55 = sphi 0, %s55
      %s57 = sphi 0, %s55
      %s58 = sphi 0, %s57
      %s72 = sphi 0, %s58
      %s76 = sphi 0, %s76
      %s78 = sphi 0, %s76
      %s79 = sphi 0, %s78
      %s93 = sphi 0, %s79
      %s97 = sphi 0, %s97
      %s99 = sphi 0, %s97
      %s100 = sphi 0, %s99
      %s114 = sphi 0, %s100
      %s118 = sphi 0, %s118
      %s120 = sphi 0, %s118
      %s121 = sphi 0, %s120
      %s135 = sphi 0, %s121
      %s139 = sphi 0, %s139
      %s141 = sphi 0, %s139
      %s142 = sphi 0, %s141
      %s156 = sphi 0, %s142
      %s160 = sphi 0, %s160
      %s162 = sphi 0, %s160
      %s163 = sphi 0, %s162
      %s177 = sphi 0, %s163
      %s183 = sphi 0, %s185
      %s186 = sphi 0, %s183
      %s187 = sphi 0, %s186
      %s203 = sphi 0, %s187
    $region4: #{tpu_custom_call.1} parent=1 // loop_header_branch
      %24 = sbr.rel (%p22) target = $region8
    $region5: #{tpu_custom_call.1} parent=1 // loop_body
      %s26 = ssub.s32 %s21, 1
      %s27 = ssub.s32 %s21, 2
      %s28 = sadd.s32 %s21, 1
      %s29 = ssub.s32 %s21, %s28
      %p30 = scmp.eq.s32.totalorder %s29, 0
      %s32 = sadd.s32 %s31, 1
      %s33 = scalar_select %p30, %s31, %s32
      %p36 = pneg %p30
      %p37 = scmp.eq.s32.totalorder %s21, 3
      %p38 = por %p36, %p37
      %p39 = scmp.ne.s32.totalorder %s31, %s34
      %p40 = scmp.eq.s32.totalorder %s21, 0
      %p41 = por %p39, %p40
      %p42 = scmp.ne.s32.totalorder %s31, %s34
      %p43 = scmp.eq.s32.totalorder %s26, 3
      %p44 = por %p42, %p43
      %p45 = scmp.ne.s32.totalorder %s34, %s35
      %p46 = scmp.eq.s32.totalorder %s26, 0
      %p47 = por %p45, %p46
      %p48 = scmp.ne.s32.totalorder %s34, %s35
      %p49 = scmp.eq.s32.totalorder %s27, 3
      %p50 = por %p48, %p49
      %p52 = scmp.ne.s32.totalorder %s35, %s51
      %p53 = scmp.eq.s32.totalorder %s27, 0
      %p54 = por %p52, %p53
      %s56 = sadd.s32 %s55, 1
      %p59 = scmp.eq.s32.totalorder %s21, 3
      %p60 = scmp.ne.s32.totalorder %s55, %s57
      %p61 = scmp.eq.s32.totalorder %s21, 0
      %p62 = por %p60, %p61
      %p63 = scmp.ne.s32.totalorder %s55, %s57
      %p64 = scmp.eq.s32.totalorder %s26, 3
      %p65 = por %p63, %p64
      %p66 = scmp.ne.s32.totalorder %s57, %s58
      %p67 = scmp.eq.s32.totalorder %s26, 0
      %p68 = por %p66, %p67
      %p69 = scmp.ne.s32.totalorder %s57, %s58
      %p70 = scmp.eq.s32.totalorder %s27, 3
      %p71 = por %p69, %p70
      %p73 = scmp.ne.s32.totalorder %s58, %s72
      %p74 = scmp.eq.s32.totalorder %s27, 0
      %p75 = por %p73, %p74
      %s77 = sadd.s32 %s76, 1
      %p80 = scmp.eq.s32.totalorder %s21, 3
      %p81 = scmp.ne.s32.totalorder %s76, %s78
      %p82 = scmp.eq.s32.totalorder %s21, 0
      %p83 = por %p81, %p82
      %p84 = scmp.ne.s32.totalorder %s76, %s78
      %p85 = scmp.eq.s32.totalorder %s26, 3
      %p86 = por %p84, %p85
      %p87 = scmp.ne.s32.totalorder %s78, %s79
      %p88 = scmp.eq.s32.totalorder %s26, 0
      %p89 = por %p87, %p88
      %p90 = scmp.ne.s32.totalorder %s78, %s79
      %p91 = scmp.eq.s32.totalorder %s27, 3
      %p92 = por %p90, %p91
      %p94 = scmp.ne.s32.totalorder %s79, %s93
      %p95 = scmp.eq.s32.totalorder %s27, 0
      %p96 = por %p94, %p95
      %s98 = sadd.s32 %s97, 1
      %p101 = scmp.eq.s32.totalorder %s21, 3
      %p102 = scmp.ne.s32.totalorder %s97, %s99
      %p103 = scmp.eq.s32.totalorder %s21, 0
      %p104 = por %p102, %p103
      %p105 = scmp.ne.s32.totalorder %s97, %s99
      %p106 = scmp.eq.s32.totalorder %s26, 3
      %p107 = por %p105, %p106
      %p108 = scmp.ne.s32.totalorder %s99, %s100
      %p109 = scmp.eq.s32.totalorder %s26, 0
      %p110 = por %p108, %p109
      %p111 = scmp.ne.s32.totalorder %s99, %s100
      %p112 = scmp.eq.s32.totalorder %s27, 3
      %p113 = por %p111, %p112
      %p115 = scmp.ne.s32.totalorder %s100, %s114
      %p116 = scmp.eq.s32.totalorder %s27, 0
      %p117 = por %p115, %p116
      %s119 = sadd.s32 %s118, 1
      %p122 = scmp.eq.s32.totalorder %s21, 3
      %p123 = scmp.ne.s32.totalorder %s118, %s120
      %p124 = scmp.eq.s32.totalorder %s21, 0
      %p125 = por %p123, %p124
      %p126 = scmp.ne.s32.totalorder %s118, %s120
      %p127 = scmp.eq.s32.totalorder %s26, 3
      %p128 = por %p126, %p127
      %p129 = scmp.ne.s32.totalorder %s120, %s121
      %p130 = scmp.eq.s32.totalorder %s26, 0
      %p131 = por %p129, %p130
      %p132 = scmp.ne.s32.totalorder %s120, %s121
      %p133 = scmp.eq.s32.totalorder %s27, 3
      %p134 = por %p132, %p133
      %p136 = scmp.ne.s32.totalorder %s121, %s135
      %p137 = scmp.eq.s32.totalorder %s27, 0
      %p138 = por %p136, %p137
      %s140 = sadd.s32 %s139, 1
      %p143 = scmp.eq.s32.totalorder %s21, 3
      %p144 = scmp.ne.s32.totalorder %s139, %s141
      %p145 = scmp.eq.s32.totalorder %s21, 0
      %p146 = por %p144, %p145
      %p147 = scmp.ne.s32.totalorder %s139, %s141
      %p148 = scmp.eq.s32.totalorder %s26, 3
      %p149 = por %p147, %p148
      %p150 = scmp.ne.s32.totalorder %s141, %s142
      %p151 = scmp.eq.s32.totalorder %s26, 0
      %p152 = por %p150, %p151
      %p153 = scmp.ne.s32.totalorder %s141, %s142
      %p154 = scmp.eq.s32.totalorder %s27, 3
      %p155 = por %p153, %p154
      %p157 = scmp.ne.s32.totalorder %s142, %s156
      %p158 = scmp.eq.s32.totalorder %s27, 0
      %p159 = por %p157, %p158
      %s161 = sadd.s32 %s160, 1
      %p164 = scmp.eq.s32.totalorder %s21, 3
      %p165 = scmp.ne.s32.totalorder %s160, %s162
      %p166 = scmp.eq.s32.totalorder %s21, 0
      %p167 = por %p165, %p166
      %p168 = scmp.ne.s32.totalorder %s160, %s162
      %p169 = scmp.eq.s32.totalorder %s26, 3
      %p170 = por %p168, %p169
      %p171 = scmp.ne.s32.totalorder %s162, %s163
      %p172 = scmp.eq.s32.totalorder %s26, 0
      %p173 = por %p171, %p172
      %p174 = scmp.ne.s32.totalorder %s162, %s163
      %p175 = scmp.eq.s32.totalorder %s27, 3
      %p176 = por %p174, %p175
      %p178 = scmp.ne.s32.totalorder %s163, %s177
      %p179 = scmp.eq.s32.totalorder %s27, 0
      %p180 = por %p178, %p179
      %s181 = ssub.s32 %s21, %s28
      %p182 = scmp.eq.s32.totalorder %s181, 0
      %s184 = sadd.s32 %s183, 1
      %s185 = scalar_select %p182, %s183, %s184
      %p188 = pneg %p182
      %p189 = scmp.eq.s32.totalorder %s21, 3
      %p190 = por %p188, %p189
      %p191 = scmp.ne.s32.totalorder %s183, %s186
      %p192 = scmp.eq.s32.totalorder %s21, 0
      %p193 = por %p191, %p192
      %p194 = scmp.ne.s32.totalorder %s183, %s186
      %p195 = scmp.eq.s32.totalorder %s26, 3
      %p196 = por %p194, %p195
      %p197 = scmp.ne.s32.totalorder %s186, %s187
      %p198 = scmp.eq.s32.totalorder %s26, 0
      %p199 = por %p197, %p198
      %p200 = scmp.ne.s32.totalorder %s186, %s187
      %p201 = scmp.eq.s32.totalorder %s27, 3
      %p202 = por %p200, %p201
      %p204 = scmp.ne.s32.totalorder %s187, %s203
      %p205 = scmp.eq.s32.totalorder %s27, 0
      %p206 = por %p204, %p205
      %p207 = scmp.le.s32.totalorder 1, %s21
      %p208 = scmp.lt.s32.totalorder %s21, 5
      %p209 = pnand %p207, %p208
      %p210 = pneg %p209
      // Predicated region
      $region9: #{tpu_custom_call.1} parent=5 // pred_check
        _
      $region10: #{tpu_custom_call.1} parent=5 // pred_check_branch
        %212 = sbr.rel (%p209) target = $region12
      $region11: #{tpu_custom_call.1} parent=5 // pred_region
        %s213 = ssub.s32 %s21, 1
        // Predicated region
        $region13: #{tpu_custom_call.1} parent=11 // pred_check
          %p214 = pneg %p68
        $region14: #{tpu_custom_call.1} parent=11 // pred_check_branch
          %216 = sbr.rel (%p214) target = $region16
        $region15: #{tpu_custom_call.1} parent=11 // pred_region
          %s218 = ssub.s32 1024, 1024
          %219 = vsyncadd [#allocation6], %s218
          %s220 = sshll.u32 [#allocation5], 4
          %s221 = int_to_ptr.vmem [resolvable:$true] %s220
          %226 = dma.hbm_to_vmem [thread:$0]  %s1, 1024, %s221, [#allocation6], 64, 64, 4
        $region16: #{tpu_custom_call.1} parent=11 // pred_fallthru
          _
        // Predicated region
        $region17: #{tpu_custom_call.1} parent=11 // pred_check
          %p227 = pneg %p89
        $region18: #{tpu_custom_call.1} parent=11 // pred_check_branch
          %229 = sbr.rel (%p227) target = $region20
        $region19: #{tpu_custom_call.1} parent=11 // pred_region
          _
        $region20: #{tpu_custom_call.1} parent=11 // pred_fallthru
          _
        // Predicated region
        $region21: #{tpu_custom_call.1} parent=11 // pred_check
          %p230 = pneg %p110
        $region22: #{tpu_custom_call.1} parent=11 // pred_check_branch
          %232 = sbr.rel (%p230) target = $region24
        $region23: #{tpu_custom_call.1} parent=11 // pred_region
          %s234 = ssub.s32 1024, 1024
          %235 = vsyncadd [#allocation6], %s234
          %s236 = sshll.u32 [#allocation7], 4
          %s237 = int_to_ptr.vmem [resolvable:$true] %s236
          %242 = dma.hbm_to_vmem [thread:$0]  %s3, 1024, %s237, [#allocation6], 64, 64, 4
        $region24: #{tpu_custom_call.1} parent=11 // pred_fallthru
          _
        // Predicated region
        $region25: #{tpu_custom_call.1} parent=11 // pred_check
          %p243 = pneg %p131
        $region26: #{tpu_custom_call.1} parent=11 // pred_check_branch
          %245 = sbr.rel (%p243) target = $region28
        $region27: #{tpu_custom_call.1} parent=11 // pred_region
          _
        $region28: #{tpu_custom_call.1} parent=11 // pred_fallthru
          _
        // Predicated region
        $region29: #{tpu_custom_call.1} parent=11 // pred_check
          %p246 = pneg %p152
        $region30: #{tpu_custom_call.1} parent=11 // pred_check_branch
          %248 = sbr.rel (%p246) target = $region32
        $region31: #{tpu_custom_call.1} parent=11 // pred_region
          %s250 = ssub.s32 1024, 1024
          %251 = vsyncadd [#allocation9], %s250
          %s252 = sshll.u32 [#allocation8], 4
          %s253 = int_to_ptr.vmem [resolvable:$true] %s252
          %258 = dma.hbm_to_vmem [thread:$0]  %s5, 1024, %s253, [#allocation9], 64, 64, 4
        $region32: #{tpu_custom_call.1} parent=11 // pred_fallthru
          _
        // Predicated region
        $region33: #{tpu_custom_call.1} parent=11 // pred_check
          %p259 = pneg %p173
        $region34: #{tpu_custom_call.1} parent=11 // pred_check_branch
          %261 = sbr.rel (%p259) target = $region36
        $region35: #{tpu_custom_call.1} parent=11 // pred_region
          _
        $region36: #{tpu_custom_call.1} parent=11 // pred_fallthru
          _
      $region12: #{tpu_custom_call.1} parent=5 // pred_fallthru
        _
      %p262 = scmp.lt.s32.totalorder %s21, 4
      // Predicated region
      $region37: #{tpu_custom_call.1} parent=5 // pred_check
        %p263 = pneg %p262
      $region38: #{tpu_custom_call.1} parent=5 // pred_check_branch
        %265 = sbr.rel (%p263) target = $region40
      $region39: #{tpu_custom_call.1} parent=5 // pred_region
        // Predicated region
        $region41: #{tpu_custom_call.1} parent=39 // pred_check
          %p266 = pneg %p41
        $region42: #{tpu_custom_call.1} parent=39 // pred_check_branch
          %268 = sbr.rel (%p266) target = $region44
        $region43: #{tpu_custom_call.1} parent=39 // pred_region
          %s269 = sand.u32 %s31, 1
          %s270 = scalar_lea.sflag [#allocation3], %s269
          %s271 = sand.u32 %s31, 1
          %s272 = smul.addr %s271, 16
          %s273 = scalar_lea.vmem [#allocation2], %s272
          %s274 = smul.u32 2, %s21
          %s276 = ssub.s32 256, 256
          %277 = vsyncadd %s270, %s276
          %s278 = smul.addr %s274, 128
          %s279 = scalar_lea.hbm %s0, %s278
          %s280 = sshll.u32 %s273, 4
          %s281 = int_to_ptr.vmem [resolvable:$true] %s280
          %286 = dma.hbm_to_vmem [thread:$0]  %s279, 256, %s281, %s270, 128, 128, 8
        $region44: #{tpu_custom_call.1} parent=39 // pred_fallthru
          _
      $region40: #{tpu_custom_call.1} parent=5 // pred_fallthru
        _
      %p287 = scmp.le.s32.totalorder 1, %s21
      %p288 = scmp.lt.s32.totalorder %s21, 5
      %p289 = pnand %p287, %p288
      %p290 = pneg %p289
      // Predicated region
      $region45: #{tpu_custom_call.1} parent=5 // pred_check
        _
      $region46: #{tpu_custom_call.1} parent=5 // pred_check_branch
        %292 = sbr.rel (%p289) target = $region48
      $region47: #{tpu_custom_call.1} parent=5 // pred_region
        %s293 = ssub.s32 %s21, 1
        %s294 = sand.u32 %s34, 1
        %s295 = scalar_lea.sflag [#allocation3], %s294
        %s296 = sand.u32 %s34, 1
        %s297 = smul.addr %s296, 16
        %s298 = scalar_lea.vmem [#allocation2], %s297
        // Predicated region
        $region49: #{tpu_custom_call.1} parent=47 // pred_check
          %p299 = pneg %p47
        $region50: #{tpu_custom_call.1} parent=47 // pred_check_branch
          %301 = sbr.rel (%p299) target = $region52
        $region51: #{tpu_custom_call.1} parent=47 // pred_region
          %302 = dma.done %s295, 256
        $region52: #{tpu_custom_call.1} parent=47 // pred_fallthru
          _
        // Predicated region
        $region53: #{tpu_custom_call.1} parent=47 // pred_check
          %p303 = pneg %p68
        $region54: #{tpu_custom_call.1} parent=47 // pred_check_branch
          %305 = sbr.rel (%p303) target = $region56
        $region55: #{tpu_custom_call.1} parent=47 // pred_region
          %306 = dma.done [#allocation6], 1024
        $region56: #{tpu_custom_call.1} parent=47 // pred_fallthru
          _
        // Predicated region
        $region57: #{tpu_custom_call.1} parent=47 // pred_check
          %p307 = pneg %p110
        $region58: #{tpu_custom_call.1} parent=47 // pred_check_branch
          %309 = sbr.rel (%p307) target = $region60
        $region59: #{tpu_custom_call.1} parent=47 // pred_region
          %310 = dma.done [#allocation6], 1024
        $region60: #{tpu_custom_call.1} parent=47 // pred_fallthru
          _
        // Predicated region
        $region61: #{tpu_custom_call.1} parent=47 // pred_check
          %p311 = pneg %p152
        $region62: #{tpu_custom_call.1} parent=47 // pred_check_branch
          %313 = sbr.rel (%p311) target = $region64
        $region63: #{tpu_custom_call.1} parent=47 // pred_region
          %314 = dma.done [#allocation9], 1024
        $region64: #{tpu_custom_call.1} parent=47 // pred_fallthru
          _
        %s315 = sand.u32 %s34, 1
        %s316 = scalar_lea.sflag [#allocation3], %s315
        %s317 = sand.u32 %s34, 1
        %s318 = smul.addr %s317, 16
        %s319 = scalar_lea.vmem [#allocation2], %s318
        %p320 = pneg %p47
        %p321 = pneg %p44
        %p322 = pneg %p68
        %p323 = pneg %p65
        %p324 = pneg %p89
        %p325 = pneg %p86
        %p326 = pneg %p110
        %p327 = pneg %p107
        %p328 = pneg %p131
        %p329 = pneg %p128
        %p330 = pneg %p152
        %p331 = pneg %p149
        %p332 = pneg %p173
        %p333 = pneg %p170
        %p334 = pneg %p199
        %p335 = pneg %p196
        %s336 = sand.u32 %s186, 1
        %s337 = scalar_lea.sflag [#allocation4], %s336
        %s338 = sand.u32 %s186, 1
        %s339 = smul.addr %s338, 16
        %s340 = scalar_lea.vmem [#allocation10], %s339
        %s341 = smul.u32 2, %s26
        %s342 = smul.u32 2, %s26
        %v344 = vld [vmem:[#allocation5] sm:$0xf]
        %v345 = vld [vmem:[#allocation5 + $0x4] sm:$0xf]
        %v346 = vld [vmem:[#allocation5 + $0x8] sm:$0xf]
        %v347 = vld [vmem:[#allocation5 + $0xc] sm:$0xf]
        %v348 = vld [vmem:[#allocation5 + $0x10] sm:$0xf]
        %v349 = vld [vmem:[#allocation5 + $0x14] sm:$0xf]
        %v350 = vld [vmem:[#allocation5 + $0x18] sm:$0xf]
        %v351 = vld [vmem:[#allocation5 + $0x1c] sm:$0xf]
        %v352 = vld [vmem:[#allocation5 + $0x20] sm:$0xf]
        %v353 = vld [vmem:[#allocation5 + $0x24] sm:$0xf]
        %v354 = vld [vmem:[#allocation5 + $0x28] sm:$0xf]
        %v355 = vld [vmem:[#allocation5 + $0x2c] sm:$0xf]
        %v356 = vld [vmem:[#allocation5 + $0x30] sm:$0xf]
        %v357 = vld [vmem:[#allocation5 + $0x34] sm:$0xf]
        %v358 = vld [vmem:[#allocation5 + $0x38] sm:$0xf]
        %v359 = vld [vmem:[#allocation5 + $0x3c] sm:$0xf]
        %v360 = vld [vmem:[#allocation7] sm:$0xf]
        %v361 = vld [vmem:[#allocation7 + $0x4] sm:$0xf]
        %v362 = vld [vmem:[#allocation7 + $0x8] sm:$0xf]
        %v363 = vld [vmem:[#allocation7 + $0xc] sm:$0xf]
        %v364 = vld [vmem:[#allocation7 + $0x10] sm:$0xf]
        %v365 = vld [vmem:[#allocation7 + $0x14] sm:$0xf]
        %v366 = vld [vmem:[#allocation7 + $0x18] sm:$0xf]
        %v367 = vld [vmem:[#allocation7 + $0x1c] sm:$0xf]
        %v368 = vld [vmem:[#allocation7 + $0x20] sm:$0xf]
        %v369 = vld [vmem:[#allocation7 + $0x24] sm:$0xf]
        %v370 = vld [vmem:[#allocation7 + $0x28] sm:$0xf]
        %v371 = vld [vmem:[#allocation7 + $0x2c] sm:$0xf]
        %v372 = vld [vmem:[#allocation7 + $0x30] sm:$0xf]
        %v373 = vld [vmem:[#allocation7 + $0x34] sm:$0xf]
        %v374 = vld [vmem:[#allocation7 + $0x38] sm:$0xf]
        %v375 = vld [vmem:[#allocation7 + $0x3c] sm:$0xf]
        %v376 = vld [vmem:[#allocation8] sm:$0xf]
        %v377 = vld [vmem:[#allocation8 + $0x4] sm:$0xf]
        %v378 = vld [vmem:[#allocation8 + $0x8] sm:$0xf]
        %v379 = vld [vmem:[#allocation8 + $0xc] sm:$0xf]
        %v380 = vld [vmem:[#allocation8 + $0x10] sm:$0xf]
        %v381 = vld [vmem:[#allocation8 + $0x14] sm:$0xf]
        %v382 = vld [vmem:[#allocation8 + $0x18] sm:$0xf]
        %v383 = vld [vmem:[#allocation8 + $0x1c] sm:$0xf]
        %v384 = vld [vmem:[#allocation8 + $0x20] sm:$0xf]
        %v385 = vld [vmem:[#allocation8 + $0x24] sm:$0xf]
        %v386 = vld [vmem:[#allocation8 + $0x28] sm:$0xf]
        %v387 = vld [vmem:[#allocation8 + $0x2c] sm:$0xf]
        %v388 = vld [vmem:[#allocation8 + $0x30] sm:$0xf]
        %v389 = vld [vmem:[#allocation8 + $0x34] sm:$0xf]
        %v390 = vld [vmem:[#allocation8 + $0x38] sm:$0xf]
        %v391 = vld [vmem:[#allocation8 + $0x3c] sm:$0xf]
        %v392 = vld [vmem:[%s298] sm:$0xff]
        %v393 = vld [vmem:[%s298 + $0x8] sm:$0xff]
        %v394 = vpack.c.bf16 %v393, %v392
        %v395 = vld [vmem:[%s2] sm:$0x1]
        %v397 = vlaneseq
        %v398 = vshrl.u32 %v397, 7
        %v399 = vsub.s32 0, %v398
        %v400 = vrot.slane %v395, %v399
        %v418 = vunpack.c.l.b16 %v344
        %v419 = vunpack.c.l.b16 %v345
        %v420 = vunpack.c.l.b16 %v346
        %v421 = vunpack.c.l.b16 %v347
        %v422 = vunpack.c.l.b16 %v348
        %v423 = vunpack.c.l.b16 %v349
        %v424 = vunpack.c.l.b16 %v350
        %v425 = vunpack.c.l.b16 %v351
        %v426 = vunpack.c.l.b16 %v352
        %v427 = vunpack.c.l.b16 %v353
        %v428 = vunpack.c.l.b16 %v354
        %v429 = vunpack.c.l.b16 %v355
        %v430 = vunpack.c.l.b16 %v356
        %v431 = vunpack.c.l.b16 %v357
        %v432 = vunpack.c.l.b16 %v358
        %v433 = vunpack.c.l.b16 %v359
        %v434 = vpack.c.b16 %v419, %v418
        %v435 = vpack.c.b16 %v421, %v420
        %v436 = vpack.c.b16 %v423, %v422
        %v437 = vpack.c.b16 %v425, %v424
        %v438 = vpack.c.b16 %v427, %v426
        %v439 = vpack.c.b16 %v429, %v428
        %v440 = vpack.c.b16 %v431, %v430
        %v441 = vpack.c.b16 %v433, %v432
        %450 = vmatprep.subr.bf16.mxu0 0
        %451 = vmatpush1.bf16.msra.mxu0 %v434
        %452 = vmatprep.subr.bf16.mxu0 0
        %453 = vmatpush1.bf16.msra.mxu0 %v435
        %454 = vmatprep.subr.bf16.mxu0 0
        %455 = vmatpush1.bf16.msra.mxu0 %v436
        %456 = vmatprep.subr.bf16.mxu0 0
        %457 = vmatpush1.bf16.msra.mxu0 %v437
        %458 = vmatprep.subr.bf16.mxu0 0
        %459 = vmatpush1.bf16.msra.mxu0 %v438
        %460 = vmatprep.subr.bf16.mxu0 0
        %461 = vmatpush1.bf16.msra.mxu0 %v439
        %462 = vmatprep.subr.bf16.mxu0 0
        %463 = vmatpush1.bf16.msra.mxu0 %v440
        %464 = vmatprep.subr.bf16.mxu0 0
        %465 = vmatpush1.bf16.msra.mxu0 %v441
        %466 = vmatprep.subr.bf16.mxu0 0
        %467 = vmatpush1.bf16.msra.mxu0 0
        %468 = vmatprep.subr.bf16.mxu0 0
        %469 = vmatpush1.bf16.msra.mxu0 0
        %470 = vmatprep.subr.bf16.mxu0 0
        %471 = vmatpush1.bf16.msra.mxu0 0
        %472 = vmatprep.subr.bf16.mxu0 0
        %473 = vmatpush1.bf16.msra.mxu0 0
        %474 = vmatprep.subr.bf16.mxu0 0
        %475 = vmatpush1.bf16.msra.mxu0 0
        %476 = vmatprep.subr.bf16.mxu0 0
        %477 = vmatpush1.bf16.msra.mxu0 0
        %478 = vmatprep.subr.bf16.mxu0 0
        %479 = vmatpush1.bf16.msra.mxu0 0
        %480 = vmatprep.subr.bf16.mxu0 0
        %481 = vmatpush1.bf16.msra.mxu0 0
        %482 = vmatprep.mubr.bf16.mxu0 0
        %483 = vmatmul.mubr.bf16.gmra.mrb[0].mxu0 %v394
        %v484 = vpop.f32.mrb[0].mxu0
        %v485 = vadd.f32 %v400, %v484
        %v486 = vpop.f32.mrb[0].mxu0
        %v487 = vpop.f32.mrb[0].mxu0
        %v488 = vadd.f32 %v400, %v487
        %v489 = vpop.f32.mrb[0].mxu0
        %490 = vdwg.mxu0
        %v491 = vmax.f32 %v485, 0.0
        %v492 = vmax.f32 %v488, 0.0
        %v493 = vpack.c.bf16 %v492, %v491
        %v494 = vld [vmem:[%s4] sm:$0x1]
        %v496 = vlaneseq
        %v497 = vshrl.u32 %v496, 7
        %v498 = vsub.s32 0, %v497
        %v499 = vrot.slane %v494, %v498
        %v517 = vunpack.c.l.b16 %v360
        %v518 = vunpack.c.l.b16 %v361
        %v519 = vunpack.c.l.b16 %v362
        %v520 = vunpack.c.l.b16 %v363
        %v521 = vunpack.c.l.b16 %v364
        %v522 = vunpack.c.l.b16 %v365
        %v523 = vunpack.c.l.b16 %v366
        %v524 = vunpack.c.l.b16 %v367
        %v525 = vunpack.c.l.b16 %v368
        %v526 = vunpack.c.l.b16 %v369
        %v527 = vunpack.c.l.b16 %v370
        %v528 = vunpack.c.l.b16 %v371
        %v529 = vunpack.c.l.b16 %v372
        %v530 = vunpack.c.l.b16 %v373
        %v531 = vunpack.c.l.b16 %v374
        %v532 = vunpack.c.l.b16 %v375
        %v533 = vpack.c.b16 %v518, %v517
        %v534 = vpack.c.b16 %v520, %v519
        %v535 = vpack.c.b16 %v522, %v521
        %v536 = vpack.c.b16 %v524, %v523
        %v537 = vpack.c.b16 %v526, %v525
        %v538 = vpack.c.b16 %v528, %v527
        %v539 = vpack.c.b16 %v530, %v529
        %v540 = vpack.c.b16 %v532, %v531
        %549 = vmatprep.subr.bf16.mxu0 0
        %550 = vmatpush1.bf16.msra.mxu0 %v533
        %551 = vmatprep.subr.bf16.mxu0 0
        %552 = vmatpush1.bf16.msra.mxu0 %v534
        %553 = vmatprep.subr.bf16.mxu0 0
        %554 = vmatpush1.bf16.msra.mxu0 %v535
        %555 = vmatprep.subr.bf16.mxu0 0
        %556 = vmatpush1.bf16.msra.mxu0 %v536
        %557 = vmatprep.subr.bf16.mxu0 0
        %558 = vmatpush1.bf16.msra.mxu0 %v537
        %559 = vmatprep.subr.bf16.mxu0 0
        %560 = vmatpush1.bf16.msra.mxu0 %v538
        %561 = vmatprep.subr.bf16.mxu0 0
        %562 = vmatpush1.bf16.msra.mxu0 %v539
        %563 = vmatprep.subr.bf16.mxu0 0
        %564 = vmatpush1.bf16.msra.mxu0 %v540
        %565 = vmatprep.subr.bf16.mxu0 0
        %566 = vmatpush1.bf16.msra.mxu0 0
        %567 = vmatprep.subr.bf16.mxu0 0
        %568 = vmatpush1.bf16.msra.mxu0 0
        %569 = vmatprep.subr.bf16.mxu0 0
        %570 = vmatpush1.bf16.msra.mxu0 0
        %571 = vmatprep.subr.bf16.mxu0 0
        %572 = vmatpush1.bf16.msra.mxu0 0
        %573 = vmatprep.subr.bf16.mxu0 0
        %574 = vmatpush1.bf16.msra.mxu0 0
        %575 = vmatprep.subr.bf16.mxu0 0
        %576 = vmatpush1.bf16.msra.mxu0 0
        %577 = vmatprep.subr.bf16.mxu0 0
        %578 = vmatpush1.bf16.msra.mxu0 0
        %579 = vmatprep.subr.bf16.mxu0 0
        %580 = vmatpush1.bf16.msra.mxu0 0
        %581 = vmatprep.mubr.bf16.mxu0 0
        %582 = vmatmul.mubr.bf16.gmra.mrb[0].mxu0 %v493
        %v583 = vpop.f32.mrb[0].mxu0
        %v584 = vadd.f32 %v499, %v583
        %v585 = vpop.f32.mrb[0].mxu0
        %v586 = vpop.f32.mrb[0].mxu0
        %v587 = vadd.f32 %v499, %v586
        %v588 = vpop.f32.mrb[0].mxu0
        %589 = vdwg.mxu0
        %v590 = vmax.f32 %v584, 0.0
        %v591 = vmax.f32 %v587, 0.0
        %v592 = vpack.c.bf16 %v591, %v590
        %v593 = vld [vmem:[%s6] sm:$0x1]
        %v595 = vlaneseq
        %v596 = vshrl.u32 %v595, 7
        %v597 = vsub.s32 0, %v596
        %v598 = vrot.slane %v593, %v597
        %v616 = vunpack.c.l.b16 %v376
        %v617 = vunpack.c.l.b16 %v377
        %v618 = vunpack.c.l.b16 %v378
        %v619 = vunpack.c.l.b16 %v379
        %v620 = vunpack.c.l.b16 %v380
        %v621 = vunpack.c.l.b16 %v381
        %v622 = vunpack.c.l.b16 %v382
        %v623 = vunpack.c.l.b16 %v383
        %v624 = vunpack.c.l.b16 %v384
        %v625 = vunpack.c.l.b16 %v385
        %v626 = vunpack.c.l.b16 %v386
        %v627 = vunpack.c.l.b16 %v387
        %v628 = vunpack.c.l.b16 %v388
        %v629 = vunpack.c.l.b16 %v389
        %v630 = vunpack.c.l.b16 %v390
        %v631 = vunpack.c.l.b16 %v391
        %v632 = vpack.c.b16 %v617, %v616
        %v633 = vpack.c.b16 %v619, %v618
        %v634 = vpack.c.b16 %v621, %v620
        %v635 = vpack.c.b16 %v623, %v622
        %v636 = vpack.c.b16 %v625, %v624
        %v637 = vpack.c.b16 %v627, %v626
        %v638 = vpack.c.b16 %v629, %v628
        %v639 = vpack.c.b16 %v631, %v630
        %648 = vmatprep.subr.bf16.mxu0 0
        %649 = vmatpush1.bf16.msra.mxu0 %v632
        %650 = vmatprep.subr.bf16.mxu0 0
        %651 = vmatpush1.bf16.msra.mxu0 %v633
        %652 = vmatprep.subr.bf16.mxu0 0
        %653 = vmatpush1.bf16.msra.mxu0 %v634
        %654 = vmatprep.subr.bf16.mxu0 0
        %655 = vmatpush1.bf16.msra.mxu0 %v635
        %656 = vmatprep.subr.bf16.mxu0 0
        %657 = vmatpush1.bf16.msra.mxu0 %v636
        %658 = vmatprep.subr.bf16.mxu0 0
        %659 = vmatpush1.bf16.msra.mxu0 %v637
        %660 = vmatprep.subr.bf16.mxu0 0
        %661 = vmatpush1.bf16.msra.mxu0 %v638
        %662 = vmatprep.subr.bf16.mxu0 0
        %663 = vmatpush1.bf16.msra.mxu0 %v639
        %664 = vmatprep.subr.bf16.mxu0 0
        %665 = vmatpush1.bf16.msra.mxu0 0
        %666 = vmatprep.subr.bf16.mxu0 0
        %667 = vmatpush1.bf16.msra.mxu0 0
        %668 = vmatprep.subr.bf16.mxu0 0
        %669 = vmatpush1.bf16.msra.mxu0 0
        %670 = vmatprep.subr.bf16.mxu0 0
        %671 = vmatpush1.bf16.msra.mxu0 0
        %672 = vmatprep.subr.bf16.mxu0 0
        %673 = vmatpush1.bf16.msra.mxu0 0
        %674 = vmatprep.subr.bf16.mxu0 0
        %675 = vmatpush1.bf16.msra.mxu0 0
        %676 = vmatprep.subr.bf16.mxu0 0
        %677 = vmatpush1.bf16.msra.mxu0 0
        %678 = vmatprep.subr.bf16.mxu0 0
        %679 = vmatpush1.bf16.msra.mxu0 0
        %680 = vmatprep.mubr.bf16.mxu0 0
        %681 = vmatmul.mubr.bf16.gmra.mrb[0].mxu0 %v592
        %v682 = vpop.f32.mrb[0].mxu0
        %v683 = vadd.f32 %v598, %v682
        %v684 = vpop.f32.mrb[0].mxu0
        %v685 = vpop.f32.mrb[0].mxu0
        %v686 = vadd.f32 %v598, %v685
        %v687 = vpop.f32.mrb[0].mxu0
        %688 = vdwg.mxu0
        %v689 = vmax.f32 %v683, 0.0
        %v690 = vmax.f32 %v686, 0.0
        %691 = vst [vmem:[%s340] sm:$0xff] %v689
        %692 = vst [vmem:[%s340 + $0x8] sm:$0xff] %v690
        %s693 = sand.u32 %s186, 1
        %s694 = scalar_lea.sflag [#allocation4], %s693
        %s695 = sand.u32 %s186, 1
        %s696 = smul.addr %s695, 16
        %s697 = scalar_lea.vmem [#allocation10], %s696
        // Predicated region
        $region65: #{tpu_custom_call.1} parent=47 // pred_check
          %p698 = pneg %p196
        $region66: #{tpu_custom_call.1} parent=47 // pred_check_branch
          %700 = sbr.rel (%p698) target = $region68
        $region67: #{tpu_custom_call.1} parent=47 // pred_region
          %s701 = smul.u32 2, %s26
          %s703 = ssub.s32 256, 256
          %704 = vsyncadd %s694, %s703
          %s705 = smul.addr %s701, 128
          %s706 = scalar_lea.hbm %s7, %s705
          %s707 = sshll.u32 %s697, 4
          %s708 = int_to_ptr.vmem [resolvable:$true] %s707
          %713 = dma.vmem_to_hbm [thread:$0]  %s708, 256, %s706, %s694, 128, 128, 8
        $region68: #{tpu_custom_call.1} parent=47 // pred_fallthru
          _
      $region48: #{tpu_custom_call.1} parent=5 // pred_fallthru
        _
      %p714 = scmp.le.s32.totalorder 2, %s21
      // Predicated region
      $region69: #{tpu_custom_call.1} parent=5 // pred_check
        %p715 = pneg %p714
      $region70: #{tpu_custom_call.1} parent=5 // pred_check_branch
        %717 = sbr.rel (%p715) target = $region72
      $region71: #{tpu_custom_call.1} parent=5 // pred_region
        %s718 = ssub.s32 %s21, 2
        // Predicated region
        $region73: #{tpu_custom_call.1} parent=71 // pred_check
          %p719 = pneg %p202
        $region74: #{tpu_custom_call.1} parent=71 // pred_check_branch
          %721 = sbr.rel (%p719) target = $region76
        $region75: #{tpu_custom_call.1} parent=71 // pred_region
          %s722 = sand.u32 %s187, 1
          %s723 = scalar_lea.sflag [#allocation4], %s722
          %s724 = sand.u32 %s187, 1
          %s725 = smul.addr %s724, 16
          %s726 = scalar_lea.vmem [#allocation10], %s725
          %727 = dma.done %s723, 256
        $region76: #{tpu_custom_call.1} parent=71 // pred_fallthru
          _
      $region72: #{tpu_custom_call.1} parent=5 // pred_fallthru
        _
    $region6: #{tpu_custom_call.1} parent=1 // loop_footer
      %s25 = sadd.s32 1, %s21
    $region7: #{tpu_custom_call.1} parent=1 // loop_footer_branch
      %20 = sbr.rel target = $region3
    $region8: #{tpu_custom_call.1} parent=1 // loop_exit
      _
    %728 = vsyncpa [#allocation3], 1
    %s729 = scalar_lea.sflag [#allocation3], 1
    %730 = vsyncpa %s729, 1
    %731 = vsyncpa [#allocation6], 1
    %732 = vsyncpa [#allocation9], 1
    %733 = vsyncpa [#allocation4], 1
    %s734 = scalar_lea.sflag [#allocation4], 1
    %735 = vsyncpa %s734, 1

// kernel: tpu_custom_call.1
$region0: #{tpu_custom_call.1}
  #allocation0 [shape = 'u32[]', space=smem, size = 0x4, offset = 0x4, fixed_abs, tag = 'smem constant byte address 0x4 - core index']
  #allocation1 [shape = 'u32[144,128]{1,0:T(1,128)}', space=vmem, size = 0x12000, scoped, tag = 'internal scratch']
  %s0 = inlined_call_operand.hbm [shape: f32[64,128], index: 0, kind: input, shape index: {}]
  %s1 = inlined_call_operand.hbm [shape: bf16[128,128], index: 1, kind: input, shape index: {}]
  %s2 = inlined_call_operand.vmem [shape: f32[1,128], index: 2, kind: input, shape index: {}]
  %s3 = inlined_call_operand.hbm [shape: bf16[128,128], index: 3, kind: input, shape index: {}]
  %s4 = inlined_call_operand.vmem [shape: f32[1,128], index: 4, kind: input, shape index: {}]
  %s5 = inlined_call_operand.hbm [shape: bf16[128,128], index: 5, kind: input, shape index: {}]
  %s6 = inlined_call_operand.vmem [shape: f32[1,128], index: 6, kind: input, shape index: {}]
  %s7 = inlined_call_operand.hbm [shape: f32[64,128], index: 7, kind: output, shape index: {}]
  %s8 = sld [smem:[#allocation0]]
  $region77: #{tpu_custom_call.1} parent=0
    _
  %s10 = ssub.s32 1, %s8
  %s11 = scalar_select 0, %s10, %s8
  $region1: #{tpu_custom_call.1} parent=0
    #allocation2 [shape = 'u8[16384]{0}', space=vmem, size = 0x4000, scoped, tag = 'input window, operand 0']
    #allocation3 [shape = 's32[2]{0}', space=sflag, size = 0x8, scoped, tag = 'scoped memory for tpu_custom_call.1']
    #allocation4 [shape = 's32[2]{0}', space=sflag, size = 0x8, scoped, tag = 'scoped memory for tpu_custom_call.1']
    #allocation5 [shape = 'u8[32768]{0}', space=vmem, size = 0x8000, scoped, tag = 'input window, operand 1, single buffered']
    #allocation6 [shape = 's32[1]{0}', space=sflag, size = 0x4, scoped, tag = 'scoped memory for tpu_custom_call.1']
    #allocation7 [shape = 'u8[32768]{0}', space=vmem, size = 0x8000, scoped, tag = 'input window, operand 3, single buffered']
    #allocation8 [shape = 'u8[32768]{0}', space=vmem, size = 0x8000, scoped, tag = 'input window, operand 5, single buffered']
    #allocation9 [shape = 's32[1]{0}', space=sflag, size = 0x4, scoped, tag = 'scoped memory for tpu_custom_call.1']
    #allocation10 [shape = 'u8[16384]{0}', space=vmem, size = 0x4000, scoped, tag = 'output window, operand 0']
    %12 = vsyncpa [#allocation3], 0
    %s13 = scalar_lea.sflag [#allocation3], 1
    %14 = vsyncpa %s13, 0
    %15 = vsyncpa [#allocation6], 0
    %16 = vsyncpa [#allocation9], 0
    %17 = vsyncpa [#allocation4], 0
    %s18 = scalar_lea.sflag [#allocation4], 1
    %19 = vsyncpa %s18, 0
    loop: start=0, step=1, limit=6
    $region2: #{tpu_custom_call.1} parent=1 // loop_pre_header
      _
    $region3: #{tpu_custom_call.1} parent=1 // loop_header
      %s21 = sphi 0, %s25
      %p22 = scmp.ge.s32.totalorder %s21, 6
      %s31 = sphi 0, %s33
      %s34 = sphi 0, %s31
      %s35 = sphi 0, %s34
      %s51 = sphi 0, %s35
      %s55 = sphi 0, %s55
      %s57 = sphi 0, %s55
      %s58 = sphi 0, %s57
      %s72 = sphi 0, %s58
      %s76 = sphi 0, %s76
      %s78 = sphi 0, %s76
      %s79 = sphi 0, %s78
      %s93 = sphi 0, %s79
      %s97 = sphi 0, %s97
      %s99 = sphi 0, %s97
      %s100 = sphi 0, %s99
      %s114 = sphi 0, %s100
      %s118 = sphi 0, %s118
      %s120 = sphi 0, %s118
      %s121 = sphi 0, %s120
      %s135 = sphi 0, %s121
      %s139 = sphi 0, %s139
      %s141 = sphi 0, %s139
      %s142 = sphi 0, %s141
      %s156 = sphi 0, %s142
      %s160 = sphi 0, %s160
      %s162 = sphi 0, %s160
      %s163 = sphi 0, %s162
      %s177 = sphi 0, %s163
      %s183 = sphi 0, %s185
      %s186 = sphi 0, %s183
      %s187 = sphi 0, %s186
      %s203 = sphi 0, %s187
    $region4: #{tpu_custom_call.1} parent=1 // loop_header_branch
      %24 = sbr.rel (%p22) target = $region8
    $region5: #{tpu_custom_call.1} parent=1 // loop_body
      %s26 = ssub.s32 %s21, 1
      %s27 = ssub.s32 %s21, 2
      %s28 = sadd.s32 %s21, 1
      %s29 = ssub.s32 %s21, %s28
      %p30 = scmp.eq.s32.totalorder %s29, 0
      %s32 = sadd.s32 %s31, 1
      %s33 = scalar_select %p30, %s31, %s32
      %p36 = pneg %p30
      %p37 = scmp.eq.s32.totalorder %s21, 3
      %p38 = por %p36, %p37
      %p39 = scmp.ne.s32.totalorder %s31, %s34
      %p40 = scmp.eq.s32.totalorder %s21, 0
      %p41 = por %p39, %p40
      %p42 = scmp.ne.s32.totalorder %s31, %s34
      %p43 = scmp.eq.s32.totalorder %s26, 3
      %p44 = por %p42, %p43
      %p45 = scmp.ne.s32.totalorder %s34, %s35
      %p46 = scmp.eq.s32.totalorder %s26, 0
      %p47 = por %p45, %p46
      %p48 = scmp.ne.s32.totalorder %s34, %s35
      %p49 = scmp.eq.s32.totalorder %s27, 3
      %p50 = por %p48, %p49
      %p52 = scmp.ne.s32.totalorder %s35, %s51
      %p53 = scmp.eq.s32.totalorder %s27, 0
      %p54 = por %p52, %p53
      %s56 = sadd.s32 %s55, 1
      %p59 = scmp.eq.s32.totalorder %s21, 3
      %p60 = scmp.ne.s32.totalorder %s55, %s57
      %p61 = scmp.eq.s32.totalorder %s21, 0
      %p62 = por %p60, %p61
      %p63 = scmp.ne.s32.totalorder %s55, %s57
      %p64 = scmp.eq.s32.totalorder %s26, 3
      %p65 = por %p63, %p64
      %p66 = scmp.ne.s32.totalorder %s57, %s58
      %p67 = scmp.eq.s32.totalorder %s26, 0
      %p68 = por %p66, %p67
      %p69 = scmp.ne.s32.totalorder %s57, %s58
      %p70 = scmp.eq.s32.totalorder %s27, 3
      %p71 = por %p69, %p70
      %p73 = scmp.ne.s32.totalorder %s58, %s72
      %p74 = scmp.eq.s32.totalorder %s27, 0
      %p75 = por %p73, %p74
      %s77 = sadd.s32 %s76, 1
      %p80 = scmp.eq.s32.totalorder %s21, 3
      %p81 = scmp.ne.s32.totalorder %s76, %s78
      %p82 = scmp.eq.s32.totalorder %s21, 0
      %p83 = por %p81, %p82
      %p84 = scmp.ne.s32.totalorder %s76, %s78
      %p85 = scmp.eq.s32.totalorder %s26, 3
      %p86 = por %p84, %p85
      %p87 = scmp.ne.s32.totalorder %s78, %s79
      %p88 = scmp.eq.s32.totalorder %s26, 0
      %p89 = por %p87, %p88
      %p90 = scmp.ne.s32.totalorder %s78, %s79
      %p91 = scmp.eq.s32.totalorder %s27, 3
      %p92 = por %p90, %p91
      %p94 = scmp.ne.s32.totalorder %s79, %s93
      %p95 = scmp.eq.s32.totalorder %s27, 0
      %p96 = por %p94, %p95
      %s98 = sadd.s32 %s97, 1
      %p101 = scmp.eq.s32.totalorder %s21, 3
      %p102 = scmp.ne.s32.totalorder %s97, %s99
      %p103 = scmp.eq.s32.totalorder %s21, 0
      %p104 = por %p102, %p103
      %p105 = scmp.ne.s32.totalorder %s97, %s99
      %p106 = scmp.eq.s32.totalorder %s26, 3
      %p107 = por %p105, %p106
      %p108 = scmp.ne.s32.totalorder %s99, %s100
      %p109 = scmp.eq.s32.totalorder %s26, 0
      %p110 = por %p108, %p109
      %p111 = scmp.ne.s32.totalorder %s99, %s100
      %p112 = scmp.eq.s32.totalorder %s27, 3
      %p113 = por %p111, %p112
      %p115 = scmp.ne.s32.totalorder %s100, %s114
      %p116 = scmp.eq.s32.totalorder %s27, 0
      %p117 = por %p115, %p116
      %s119 = sadd.s32 %s118, 1
      %p122 = scmp.eq.s32.totalorder %s21, 3
      %p123 = scmp.ne.s32.totalorder %s118, %s120
      %p124 = scmp.eq.s32.totalorder %s21, 0
      %p125 = por %p123, %p124
      %p126 = scmp.ne.s32.totalorder %s118, %s120
      %p127 = scmp.eq.s32.totalorder %s26, 3
      %p128 = por %p126, %p127
      %p129 = scmp.ne.s32.totalorder %s120, %s121
      %p130 = scmp.eq.s32.totalorder %s26, 0
      %p131 = por %p129, %p130
      %p132 = scmp.ne.s32.totalorder %s120, %s121
      %p133 = scmp.eq.s32.totalorder %s27, 3
      %p134 = por %p132, %p133
      %p136 = scmp.ne.s32.totalorder %s121, %s135
      %p137 = scmp.eq.s32.totalorder %s27, 0
      %p138 = por %p136, %p137
      %s140 = sadd.s32 %s139, 1
      %p143 = scmp.eq.s32.totalorder %s21, 3
      %p144 = scmp.ne.s32.totalorder %s139, %s141
      %p145 = scmp.eq.s32.totalorder %s21, 0
      %p146 = por %p144, %p145
      %p147 = scmp.ne.s32.totalorder %s139, %s141
      %p148 = scmp.eq.s32.totalorder %s26, 3
      %p149 = por %p147, %p148
      %p150 = scmp.ne.s32.totalorder %s141, %s142
      %p151 = scmp.eq.s32.totalorder %s26, 0
      %p152 = por %p150, %p151
      %p153 = scmp.ne.s32.totalorder %s141, %s142
      %p154 = scmp.eq.s32.totalorder %s27, 3
      %p155 = por %p153, %p154
      %p157 = scmp.ne.s32.totalorder %s142, %s156
      %p158 = scmp.eq.s32.totalorder %s27, 0
      %p159 = por %p157, %p158
      %s161 = sadd.s32 %s160, 1
      %p164 = scmp.eq.s32.totalorder %s21, 3
      %p165 = scmp.ne.s32.totalorder %s160, %s162
      %p166 = scmp.eq.s32.totalorder %s21, 0
      %p167 = por %p165, %p166
      %p168 = scmp.ne.s32.totalorder %s160, %s162
      %p169 = scmp.eq.s32.totalorder %s26, 3
      %p170 = por %p168, %p169
      %p171 = scmp.ne.s32.totalorder %s162, %s163
      %p172 = scmp.eq.s32.totalorder %s26, 0
      %p173 = por %p171, %p172
      %p174 = scmp.ne.s32.totalorder %s162, %s163
      %p175 = scmp.eq.s32.totalorder %s27, 3
      %p176 = por %p174, %p175
      %p178 = scmp.ne.s32.totalorder %s163, %s177
      %p179 = scmp.eq.s32.totalorder %s27, 0
      %p180 = por %p178, %p179
      %s181 = ssub.s32 %s21, %s28
      %p182 = scmp.eq.s32.totalorder %s181, 0
      %s184 = sadd.s32 %s183, 1
      %s185 = scalar_select %p182, %s183, %s184
      %p188 = pneg %p182
      %p189 = scmp.eq.s32.totalorder %s21, 3
      %p190 = por %p188, %p189
      %p191 = scmp.ne.s32.totalorder %s183, %s186
      %p192 = scmp.eq.s32.totalorder %s21, 0
      %p193 = por %p191, %p192
      %p194 = scmp.ne.s32.totalorder %s183, %s186
      %p195 = scmp.eq.s32.totalorder %s26, 3
      %p196 = por %p194, %p195
      %p197 = scmp.ne.s32.totalorder %s186, %s187
      %p198 = scmp.eq.s32.totalorder %s26, 0
      %p199 = por %p197, %p198
      %p200 = scmp.ne.s32.totalorder %s186, %s187
      %p201 = scmp.eq.s32.totalorder %s27, 3
      %p202 = por %p200, %p201
      %p204 = scmp.ne.s32.totalorder %s187, %s203
      %p205 = scmp.eq.s32.totalorder %s27, 0
      %p206 = por %p204, %p205
      %p207 = scmp.le.s32.totalorder 1, %s21
      %p208 = scmp.lt.s32.totalorder %s21, 5
      %p209 = pnand %p207, %p208
      %p210 = pneg %p209
      // Predicated region
      $region9: #{tpu_custom_call.1} parent=5 // pred_check
        _
      $region10: #{tpu_custom_call.1} parent=5 // pred_check_branch
        %212 = sbr.rel (%p209) target = $region12
      $region11: #{tpu_custom_call.1} parent=5 // pred_region
        %s213 = ssub.s32 %s21, 1
        // Predicated region
        $region13: #{tpu_custom_call.1} parent=11 // pred_check
          %p214 = pneg %p68
        $region14: #{tpu_custom_call.1} parent=11 // pred_check_branch
          %216 = sbr.rel (%p214) target = $region16
        $region15: #{tpu_custom_call.1} parent=11 // pred_region
          %s218 = ssub.s32 1024, 1024
          %219 = vsyncadd [#allocation6], %s218
          %s220 = sshll.u32 [#allocation5], 4
          %s221 = int_to_ptr.vmem [resolvable:$true] %s220
          %226 = dma.hbm_to_vmem [thread:$0]  %s1, 1024, %s221, [#allocation6], 64, 64, 4
        $region16: #{tpu_custom_call.1} parent=11 // pred_fallthru
          _
        // Predicated region
        $region17: #{tpu_custom_call.1} parent=11 // pred_check
          %p227 = pneg %p89
        $region18: #{tpu_custom_call.1} parent=11 // pred_check_branch
          %229 = sbr.rel (%p227) target = $region20
        $region19: #{tpu_custom_call.1} parent=11 // pred_region
          _
        $region20: #{tpu_custom_call.1} parent=11 // pred_fallthru
          _
        // Predicated region
        $region21: #{tpu_custom_call.1} parent=11 // pred_check
          %p230 = pneg %p110
        $region22: #{tpu_custom_call.1} parent=11 // pred_check_branch
          %232 = sbr.rel (%p230) target = $region24
        $region23: #{tpu_custom_call.1} parent=11 // pred_region
          %s234 = ssub.s32 1024, 1024
          %235 = vsyncadd [#allocation6], %s234
          %s236 = sshll.u32 [#allocation7], 4
          %s237 = int_to_ptr.vmem [resolvable:$true] %s236
          %242 = dma.hbm_to_vmem [thread:$0]  %s3, 1024, %s237, [#allocation6], 64, 64, 4
        $region24: #{tpu_custom_call.1} parent=11 // pred_fallthru
          _
        // Predicated region
        $region25: #{tpu_custom_call.1} parent=11 // pred_check
          %p243 = pneg %p131
        $region26: #{tpu_custom_call.1} parent=11 // pred_check_branch
          %245 = sbr.rel (%p243) target = $region28
        $region27: #{tpu_custom_call.1} parent=11 // pred_region
          _
        $region28: #{tpu_custom_call.1} parent=11 // pred_fallthru
          _
        // Predicated region
        $region29: #{tpu_custom_call.1} parent=11 // pred_check
          %p246 = pneg %p152
        $region30: #{tpu_custom_call.1} parent=11 // pred_check_branch
          %248 = sbr.rel (%p246) target = $region32
        $region31: #{tpu_custom_call.1} parent=11 // pred_region
          %s250 = ssub.s32 1024, 1024
          %251 = vsyncadd [#allocation9], %s250
          %s252 = sshll.u32 [#allocation8], 4
          %s253 = int_to_ptr.vmem [resolvable:$true] %s252
          %258 = dma.hbm_to_vmem [thread:$0]  %s5, 1024, %s253, [#allocation9], 64, 64, 4
        $region32: #{tpu_custom_call.1} parent=11 // pred_fallthru
          _
        // Predicated region
        $region33: #{tpu_custom_call.1} parent=11 // pred_check
          %p259 = pneg %p173
        $region34: #{tpu_custom_call.1} parent=11 // pred_check_branch
          %261 = sbr.rel (%p259) target = $region36
        $region35: #{tpu_custom_call.1} parent=11 // pred_region
          _
        $region36: #{tpu_custom_call.1} parent=11 // pred_fallthru
          _
      $region12: #{tpu_custom_call.1} parent=5 // pred_fallthru
        _
      %p262 = scmp.lt.s32.totalorder %s21, 4
      // Predicated region
      $region37: #{tpu_custom_call.1} parent=5 // pred_check
        %p263 = pneg %p262
      $region38: #{tpu_custom_call.1} parent=5 // pred_check_branch
        %265 = sbr.rel (%p263) target = $region40
      $region39: #{tpu_custom_call.1} parent=5 // pred_region
        // Predicated region
        $region41: #{tpu_custom_call.1} parent=39 // pred_check
          %p266 = pneg %p41
        $region42: #{tpu_custom_call.1} parent=39 // pred_check_branch
          %268 = sbr.rel (%p266) target = $region44
        $region43: #{tpu_custom_call.1} parent=39 // pred_region
          %s269 = sand.u32 %s31, 1
          %s270 = scalar_lea.sflag [#allocation3], %s269
          %s271 = sand.u32 %s31, 1
          %s272 = smul.addr %s271, 16
          %s273 = scalar_lea.vmem [#allocation2], %s272
          %s274 = smul.u32 2, %s21
          %s276 = ssub.s32 256, 256
          %277 = vsyncadd %s270, %s276
          %s278 = smul.addr %s274, 128
          %s279 = scalar_lea.hbm %s0, %s278
          %s280 = sshll.u32 %s273, 4
          %s281 = int_to_ptr.vmem [resolvable:$true] %s280
          %286 = dma.hbm_to_vmem [thread:$0]  %s279, 256, %s281, %s270, 128, 128, 8
        $region44: #{tpu_custom_call.1} parent=39 // pred_fallthru
          _
      $region40: #{tpu_custom_call.1} parent=5 // pred_fallthru
        _
      %p287 = scmp.le.s32.totalorder 1, %s21
      %p288 = scmp.lt.s32.totalorder %s21, 5
      %p289 = pnand %p287, %p288
      %p290 = pneg %p289
      // Predicated region
      $region45: #{tpu_custom_call.1} parent=5 // pred_check
        _
      $region46: #{tpu_custom_call.1} parent=5 // pred_check_branch
        %292 = sbr.rel (%p289) target = $region48
      $region47: #{tpu_custom_call.1} parent=5 // pred_region
        %s293 = ssub.s32 %s21, 1
        %s294 = sand.u32 %s34, 1
        %s295 = scalar_lea.sflag [#allocation3], %s294
        %s296 = sand.u32 %s34, 1
        %s297 = smul.addr %s296, 16
        %s298 = scalar_lea.vmem [#allocation2], %s297
        // Predicated region
        $region49: #{tpu_custom_call.1} parent=47 // pred_check
          %p299 = pneg %p47
        $region50: #{tpu_custom_call.1} parent=47 // pred_check_branch
          %301 = sbr.rel (%p299) target = $region52
        $region51: #{tpu_custom_call.1} parent=47 // pred_region
          %302 = dma.done %s295, 256
        $region52: #{tpu_custom_call.1} parent=47 // pred_fallthru
          _
        // Predicated region
        $region53: #{tpu_custom_call.1} parent=47 // pred_check
          %p303 = pneg %p68
        $region54: #{tpu_custom_call.1} parent=47 // pred_check_branch
          %305 = sbr.rel (%p303) target = $region56
        $region55: #{tpu_custom_call.1} parent=47 // pred_region
          %306 = dma.done [#allocation6], 1024
        $region56: #{tpu_custom_call.1} parent=47 // pred_fallthru
          _
        // Predicated region
        $region57: #{tpu_custom_call.1} parent=47 // pred_check
          %p307 = pneg %p110
        $region58: #{tpu_custom_call.1} parent=47 // pred_check_branch
          %309 = sbr.rel (%p307) target = $region60
        $region59: #{tpu_custom_call.1} parent=47 // pred_region
          %310 = dma.done [#allocation6], 1024
        $region60: #{tpu_custom_call.1} parent=47 // pred_fallthru
          _
        // Predicated region
        $region61: #{tpu_custom_call.1} parent=47 // pred_check
          %p311 = pneg %p152
        $region62: #{tpu_custom_call.1} parent=47 // pred_check_branch
          %313 = sbr.rel (%p311) target = $region64
        $region63: #{tpu_custom_call.1} parent=47 // pred_region
          %314 = dma.done [#allocation9], 1024
        $region64: #{tpu_custom_call.1} parent=47 // pred_fallthru
          _
        %s315 = sand.u32 %s34, 1
        %s316 = scalar_lea.sflag [#allocation3], %s315
        %s317 = sand.u32 %s34, 1
        %s318 = smul.addr %s317, 16
        %s319 = scalar_lea.vmem [#allocation2], %s318
        %p320 = pneg %p47
        %p321 = pneg %p44
        %p322 = pneg %p68
        %p323 = pneg %p65
        %p324 = pneg %p89
        %p325 = pneg %p86
        %p326 = pneg %p110
        %p327 = pneg %p107
        %p328 = pneg %p131
        %p329 = pneg %p128
        %p330 = pneg %p152
        %p331 = pneg %p149
        %p332 = pneg %p173
        %p333 = pneg %p170
        %p334 = pneg %p199
        %p335 = pneg %p196
        %s336 = sand.u32 %s186, 1
        %s337 = scalar_lea.sflag [#allocation4], %s336
        %s338 = sand.u32 %s186, 1
        %s339 = smul.addr %s338, 16
        %s340 = scalar_lea.vmem [#allocation10], %s339
        %s341 = smul.u32 2, %s26
        %s342 = smul.u32 2, %s26
        %v344 = vld [vmem:[#allocation5] sm:$0xf]
        %v345 = vld [vmem:[#allocation5 + $0x4] sm:$0xf]
        %v346 = vld [vmem:[#allocation5 + $0x8] sm:$0xf]
        %v347 = vld [vmem:[#allocation5 + $0xc] sm:$0xf]
        %v348 = vld [vmem:[#allocation5 + $0x10] sm:$0xf]
        %v349 = vld [vmem:[#allocation5 + $0x14] sm:$0xf]
        %v350 = vld [vmem:[#allocation5 + $0x18] sm:$0xf]
        %v351 = vld [vmem:[#allocation5 + $0x1c] sm:$0xf]
        %v352 = vld [vmem:[#allocation5 + $0x20] sm:$0xf]
        %v353 = vld [vmem:[#allocation5 + $0x24] sm:$0xf]
        %v354 = vld [vmem:[#allocation5 + $0x28] sm:$0xf]
        %v355 = vld [vmem:[#allocation5 + $0x2c] sm:$0xf]
        %v356 = vld [vmem:[#allocation5 + $0x30] sm:$0xf]
        %v357 = vld [vmem:[#allocation5 + $0x34] sm:$0xf]
        %v358 = vld [vmem:[#allocation5 + $0x38] sm:$0xf]
        %v359 = vld [vmem:[#allocation5 + $0x3c] sm:$0xf]
        %v360 = vld [vmem:[#allocation7] sm:$0xf]
        %v361 = vld [vmem:[#allocation7 + $0x4] sm:$0xf]
        %v362 = vld [vmem:[#allocation7 + $0x8] sm:$0xf]
        %v363 = vld [vmem:[#allocation7 + $0xc] sm:$0xf]
        %v364 = vld [vmem:[#allocation7 + $0x10] sm:$0xf]
        %v365 = vld [vmem:[#allocation7 + $0x14] sm:$0xf]
        %v366 = vld [vmem:[#allocation7 + $0x18] sm:$0xf]
        %v367 = vld [vmem:[#allocation7 + $0x1c] sm:$0xf]
        %v368 = vld [vmem:[#allocation7 + $0x20] sm:$0xf]
        %v369 = vld [vmem:[#allocation7 + $0x24] sm:$0xf]
        %v370 = vld [vmem:[#allocation7 + $0x28] sm:$0xf]
        %v371 = vld [vmem:[#allocation7 + $0x2c] sm:$0xf]
        %v372 = vld [vmem:[#allocation7 + $0x30] sm:$0xf]
        %v373 = vld [vmem:[#allocation7 + $0x34] sm:$0xf]
        %v374 = vld [vmem:[#allocation7 + $0x38] sm:$0xf]
        %v375 = vld [vmem:[#allocation7 + $0x3c] sm:$0xf]
        %v376 = vld [vmem:[#allocation8] sm:$0xf]
        %v377 = vld [vmem:[#allocation8 + $0x4] sm:$0xf]
        %v378 = vld [vmem:[#allocation8 + $0x8] sm:$0xf]
        %v379 = vld [vmem:[#allocation8 + $0xc] sm:$0xf]
        %v380 = vld [vmem:[#allocation8 + $0x10] sm:$0xf]
        %v381 = vld [vmem:[#allocation8 + $0x14] sm:$0xf]
        %v382 = vld [vmem:[#allocation8 + $0x18] sm:$0xf]
        %v383 = vld [vmem:[#allocation8 + $0x1c] sm:$0xf]
        %v384 = vld [vmem:[#allocation8 + $0x20] sm:$0xf]
        %v385 = vld [vmem:[#allocation8 + $0x24] sm:$0xf]
        %v386 = vld [vmem:[#allocation8 + $0x28] sm:$0xf]
        %v387 = vld [vmem:[#allocation8 + $0x2c] sm:$0xf]
        %v388 = vld [vmem:[#allocation8 + $0x30] sm:$0xf]
        %v389 = vld [vmem:[#allocation8 + $0x34] sm:$0xf]
        %v390 = vld [vmem:[#allocation8 + $0x38] sm:$0xf]
        %v391 = vld [vmem:[#allocation8 + $0x3c] sm:$0xf]
        %v392 = vld [vmem:[%s298] sm:$0xff]
        %v393 = vld [vmem:[%s298 + $0x8] sm:$0xff]
        %v394 = vpack.c.bf16 %v393, %v392
        %v395 = vld [vmem:[%s2] sm:$0x1]
        %v397 = vlaneseq
        %v398 = vshrl.u32 %v397, 7
        %v399 = vsub.s32 0, %v398
        %v400 = vrot.slane %v395, %v399
        %v418 = vunpack.c.l.b16 %v344
        %v419 = vunpack.c.l.b16 %v345
        %v420 = vunpack.c.l.b16 %v346
        %v421 = vunpack.c.l.b16 %v347
        %v422 = vunpack.c.l.b16 %v348
        %v423 = vunpack.c.l.b16 %v349
        %v424 = vunpack.c.l.b16 %v350
        %v425 = vunpack.c.l.b16 %v351
        %v426 = vunpack.c.l.b16 %v352
        %v427 = vunpack.c.l.b16 %v353
        %v428 = vunpack.c.l.b16 %v354
        %v429 = vunpack.c.l.b16 %v355
        %v430 = vunpack.c.l.b16 %v356
        %v431 = vunpack.c.l.b16 %v357
        %v432 = vunpack.c.l.b16 %v358
        %v433 = vunpack.c.l.b16 %v359
        %v434 = vpack.c.b16 %v419, %v418
        %v435 = vpack.c.b16 %v421, %v420
        %v436 = vpack.c.b16 %v423, %v422
        %v437 = vpack.c.b16 %v425, %v424
        %v438 = vpack.c.b16 %v427, %v426
        %v439 = vpack.c.b16 %v429, %v428
        %v440 = vpack.c.b16 %v431, %v430
        %v441 = vpack.c.b16 %v433, %v432
        %450 = vmatprep.subr.bf16.mxu0 0
        %451 = vmatpush1.bf16.msra.mxu0 %v434
        %452 = vmatprep.subr.bf16.mxu0 0
        %453 = vmatpush1.bf16.msra.mxu0 %v435
        %454 = vmatprep.subr.bf16.mxu0 0
        %455 = vmatpush1.bf16.msra.mxu0 %v436
        %456 = vmatprep.subr.bf16.mxu0 0
        %457 = vmatpush1.bf16.msra.mxu0 %v437
        %458 = vmatprep.subr.bf16.mxu0 0
        %459 = vmatpush1.bf16.msra.mxu0 %v438
        %460 = vmatprep.subr.bf16.mxu0 0
        %461 = vmatpush1.bf16.msra.mxu0 %v439
        %462 = vmatprep.subr.bf16.mxu0 0
        %463 = vmatpush1.bf16.msra.mxu0 %v440
        %464 = vmatprep.subr.bf16.mxu0 0
        %465 = vmatpush1.bf16.msra.mxu0 %v441
        %466 = vmatprep.subr.bf16.mxu0 0
        %467 = vmatpush1.bf16.msra.mxu0 0
        %468 = vmatprep.subr.bf16.mxu0 0
        %469 = vmatpush1.bf16.msra.mxu0 0
        %470 = vmatprep.subr.bf16.mxu0 0
        %471 = vmatpush1.bf16.msra.mxu0 0
        %472 = vmatprep.subr.bf16.mxu0 0
        %473 = vmatpush1.bf16.msra.mxu0 0
        %474 = vmatprep.subr.bf16.mxu0 0
        %475 = vmatpush1.bf16.msra.mxu0 0
        %476 = vmatprep.subr.bf16.mxu0 0
        %477 = vmatpush1.bf16.msra.mxu0 0
        %478 = vmatprep.subr.bf16.mxu0 0
        %479 = vmatpush1.bf16.msra.mxu0 0
        %480 = vmatprep.subr.bf16.mxu0 0
        %481 = vmatpush1.bf16.msra.mxu0 0
        %482 = vmatprep.mubr.bf16.mxu0 0
        %483 = vmatmul.mubr.bf16.gmra.mrb[0].mxu0 %v394
        %v484 = vpop.f32.mrb[0].mxu0
        %v485 = vadd.f32 %v400, %v484
        %v486 = vpop.f32.mrb[0].mxu0
        %v487 = vpop.f32.mrb[0].mxu0
        %v488 = vadd.f32 %v400, %v487
        %v489 = vpop.f32.mrb[0].mxu0
        %490 = vdwg.mxu0
        %v491 = vmax.f32 %v485, 0.0
        %v492 = vmax.f32 %v488, 0.0
        %v493 = vpack.c.bf16 %v492, %v491
        %v494 = vld [vmem:[%s4] sm:$0x1]
        %v496 = vlaneseq
        %v497 = vshrl.u32 %v496, 7
        %v498 = vsub.s32 0, %v497
        %v499 = vrot.slane %v494, %v498
        %v517 = vunpack.c.l.b16 %v360
        %v518 = vunpack.c.l.b16 %v361
        %v519 = vunpack.c.l.b16 %v362
        %v520 = vunpack.c.l.b16 %v363
        %v521 = vunpack.c.l.b16 %v364
        %v522 = vunpack.c.l.b16 %v365
        %v523 = vunpack.c.l.b16 %v366
        %v524 = vunpack.c.l.b16 %v367
        %v525 = vunpack.c.l.b16 %v368
        %v526 = vunpack.c.l.b16 %v369
        %v527 = vunpack.c.l.b16 %v370
        %v528 = vunpack.c.l.b16 %v371
        %v529 = vunpack.c.l.b16 %v372
        %v530 = vunpack.c.l.b16 %v373
        %v531 = vunpack.c.l.b16 %v374
        %v532 = vunpack.c.l.b16 %v375
        %v533 = vpack.c.b16 %v518, %v517
        %v534 = vpack.c.b16 %v520, %v519
        %v535 = vpack.c.b16 %v522, %v521
        %v536 = vpack.c.b16 %v524, %v523
        %v537 = vpack.c.b16 %v526, %v525
        %v538 = vpack.c.b16 %v528, %v527
        %v539 = vpack.c.b16 %v530, %v529
        %v540 = vpack.c.b16 %v532, %v531
        %549 = vmatprep.subr.bf16.mxu0 0
        %550 = vmatpush1.bf16.msra.mxu0 %v533
        %551 = vmatprep.subr.bf16.mxu0 0
        %552 = vmatpush1.bf16.msra.mxu0 %v534
        %553 = vmatprep.subr.bf16.mxu0 0
        %554 = vmatpush1.bf16.msra.mxu0 %v535
        %555 = vmatprep.subr.bf16.mxu0 0
        %556 = vmatpush1.bf16.msra.mxu0 %v536
        %557 = vmatprep.subr.bf16.mxu0 0
        %558 = vmatpush1.bf16.msra.mxu0 %v537
        %559 = vmatprep.subr.bf16.mxu0 0
        %560 = vmatpush1.bf16.msra.mxu0 %v538
        %561 = vmatprep.subr.bf16.mxu0 0
        %562 = vmatpush1.bf16.msra.mxu0 %v539
        %563 = vmatprep.subr.bf16.mxu0 0
        %564 = vmatpush1.bf16.msra.mxu0 %v540
        %565 = vmatprep.subr.bf16.mxu0 0
        %566 = vmatpush1.bf16.msra.mxu0 0
        %567 = vmatprep.subr.bf16.mxu0 0
        %568 = vmatpush1.bf16.msra.mxu0 0
        %569 = vmatprep.subr.bf16.mxu0 0
        %570 = vmatpush1.bf16.msra.mxu0 0
        %571 = vmatprep.subr.bf16.mxu0 0
        %572 = vmatpush1.bf16.msra.mxu0 0
        %573 = vmatprep.subr.bf16.mxu0 0
        %574 = vmatpush1.bf16.msra.mxu0 0
        %575 = vmatprep.subr.bf16.mxu0 0
        %576 = vmatpush1.bf16.msra.mxu0 0
        %577 = vmatprep.subr.bf16.mxu0 0
        %578 = vmatpush1.bf16.msra.mxu0 0
        %579 = vmatprep.subr.bf16.mxu0 0
        %580 = vmatpush1.bf16.msra.mxu0 0
        %581 = vmatprep.mubr.bf16.mxu0 0
        %582 = vmatmul.mubr.bf16.gmra.mrb[0].mxu0 %v493
        %v583 = vpop.f32.mrb[0].mxu0
        %v584 = vadd.f32 %v499, %v583
        %v585 = vpop.f32.mrb[0].mxu0
        %v586 = vpop.f32.mrb[0].mxu0
        %v587 = vadd.f32 %v499, %v586
        %v588 = vpop.f32.mrb[0].mxu0
        %589 = vdwg.mxu0
        %v590 = vmax.f32 %v584, 0.0
        %v591 = vmax.f32 %v587, 0.0
        %v592 = vpack.c.bf16 %v591, %v590
        %v593 = vld [vmem:[%s6] sm:$0x1]
        %v595 = vlaneseq
        %v596 = vshrl.u32 %v595, 7
        %v597 = vsub.s32 0, %v596
        %v598 = vrot.slane %v593, %v597
        %v616 = vunpack.c.l.b16 %v376
        %v617 = vunpack.c.l.b16 %v377
        %v618 = vunpack.c.l.b16 %v378
        %v619 = vunpack.c.l.b16 %v379
        %v620 = vunpack.c.l.b16 %v380
        %v621 = vunpack.c.l.b16 %v381
        %v622 = vunpack.c.l.b16 %v382
        %v623 = vunpack.c.l.b16 %v383
        %v624 = vunpack.c.l.b16 %v384
        %v625 = vunpack.c.l.b16 %v385
        %v626 = vunpack.c.l.b16 %v386
        %v627 = vunpack.c.l.b16 %v387
        %v628 = vunpack.c.l.b16 %v388
        %v629 = vunpack.c.l.b16 %v389
        %v630 = vunpack.c.l.b16 %v390
        %v631 = vunpack.c.l.b16 %v391
        %v632 = vpack.c.b16 %v617, %v616
        %v633 = vpack.c.b16 %v619, %v618
        %v634 = vpack.c.b16 %v621, %v620
        %v635 = vpack.c.b16 %v623, %v622
        %v636 = vpack.c.b16 %v625, %v624
        %v637 = vpack.c.b16 %v627, %v626
        %v638 = vpack.c.b16 %v629, %v628
        %v639 = vpack.c.b16 %v631, %v630
        %648 = vmatprep.subr.bf16.mxu0 0
        %649 = vmatpush1.bf16.msra.mxu0 %v632
        %650 = vmatprep.subr.bf16.mxu0 0
        %651 = vmatpush1.bf16.msra.mxu0 %v633
        %652 = vmatprep.subr.bf16.mxu0 0
        %653 = vmatpush1.bf16.msra.mxu0 %v634
        %654 = vmatprep.subr.bf16.mxu0 0
        %655 = vmatpush1.bf16.msra.mxu0 %v635
        %656 = vmatprep.subr.bf16.mxu0 0
        %657 = vmatpush1.bf16.msra.mxu0 %v636
        %658 = vmatprep.subr.bf16.mxu0 0
        %659 = vmatpush1.bf16.msra.mxu0 %v637
        %660 = vmatprep.subr.bf16.mxu0 0
        %661 = vmatpush1.bf16.msra.mxu0 %v638
        %662 = vmatprep.subr.bf16.mxu0 0
        %663 = vmatpush1.bf16.msra.mxu0 %v639
        %664 = vmatprep.subr.bf16.mxu0 0
        %665 = vmatpush1.bf16.msra.mxu0 0
        %666 = vmatprep.subr.bf16.mxu0 0
        %667 = vmatpush1.bf16.msra.mxu0 0
        %668 = vmatprep.subr.bf16.mxu0 0
        %669 = vmatpush1.bf16.msra.mxu0 0
        %670 = vmatprep.subr.bf16.mxu0 0
        %671 = vmatpush1.bf16.msra.mxu0 0
        %672 = vmatprep.subr.bf16.mxu0 0
        %673 = vmatpush1.bf16.msra.mxu0 0
        %674 = vmatprep.subr.bf16.mxu0 0
        %675 = vmatpush1.bf16.msra.mxu0 0
        %676 = vmatprep.subr.bf16.mxu0 0
        %677 = vmatpush1.bf16.msra.mxu0 0
        %678 = vmatprep.subr.bf16.mxu0 0
        %679 = vmatpush1.bf16.msra.mxu0 0
        %680 = vmatprep.mubr.bf16.mxu0 0
        %681 = vmatmul.mubr.bf16.gmra.mrb[0].mxu0 %v592
        %v682 = vpop.f32.mrb[0].mxu0
        %v683 = vadd.f32 %v598, %v682
        %v684 = vpop.f32.mrb[0].mxu0
        %v685 = vpop.f32.mrb[0].mxu0
        %v686 = vadd.f32 %v598, %v685
        %v687 = vpop.f32.mrb[0].mxu0
        %688 = vdwg.mxu0
        %v689 = vmax.f32 %v683, 0.0
        %v690 = vmax.f32 %v686, 0.0
        %691 = vst [vmem:[%s340] sm:$0xff] %v689
        %692 = vst [vmem:[%s340 + $0x8] sm:$0xff] %v690
        %s693 = sand.u32 %s186, 1
        %s694 = scalar_lea.sflag [#allocation4], %s693
        %s695 = sand.u32 %s186, 1
        %s696 = smul.addr %s695, 16
        %s697 = scalar_lea.vmem [#allocation10], %s696
        // Predicated region
        $region65: #{tpu_custom_call.1} parent=47 // pred_check
          %p698 = pneg %p196
        $region66: #{tpu_custom_call.1} parent=47 // pred_check_branch
          %700 = sbr.rel (%p698) target = $region68
        $region67: #{tpu_custom_call.1} parent=47 // pred_region
          %s701 = smul.u32 2, %s26
          %s703 = ssub.s32 256, 256
          %704 = vsyncadd %s694, %s703
          %s705 = smul.addr %s701, 128
          %s706 = scalar_lea.hbm %s7, %s705
          %s707 = sshll.u32 %s697, 4
          %s708 = int_to_ptr.vmem [resolvable:$true] %s707
          %713 = dma.vmem_to_hbm [thread:$0]  %s708, 256, %s706, %s694, 128, 128, 8
        $region68: #{tpu_custom_call.1} parent=47 // pred_fallthru
          _
      $region48: #{tpu_custom_call.1} parent=5 // pred_fallthru
        _
      %p714 = scmp.le.s32.totalorder 2, %s21
      // Predicated region
      $region69: #{tpu_custom_call.1} parent=5 // pred_check
        %p715 = pneg %p714
      $region70: #{tpu_custom_call.1} parent=5 // pred_check_branch
        %717 = sbr.rel (%p715) target = $region72
      $region71: #{tpu_custom_call.1} parent=5 // pred_region
        %s718 = ssub.s32 %s21, 2
        // Predicated region
        $region73: #{tpu_custom_call.1} parent=71 // pred_check
          %p719 = pneg %p202
        $region74: #{tpu_custom_call.1} parent=71 // pred_check_branch
          %721 = sbr.rel (%p719) target = $region76
        $region75: #{tpu_custom_call.1} parent=71 // pred_region
          %s722 = sand.u32 %s187, 1
          %s723 = scalar_lea.sflag [#allocation4], %s722
          %s724 = sand.u32 %s187, 1
          %s725 = smul.addr %s724, 16
          %s726 = scalar_lea.vmem [#allocation10], %s725
          %727 = dma.done %s723, 256
        $region76: #{tpu_custom_call.1} parent=71 // pred_fallthru
          _
      $region72: #{tpu_custom_call.1} parent=5 // pred_fallthru
        _
    $region6: #{tpu_custom_call.1} parent=1 // loop_footer
      %s25 = sadd.s32 1, %s21
    $region7: #{tpu_custom_call.1} parent=1 // loop_footer_branch
      %20 = sbr.rel target = $region3
    $region8: #{tpu_custom_call.1} parent=1 // loop_exit
      _
    %728 = vsyncpa [#allocation3], 1
    %s729 = scalar_lea.sflag [#allocation3], 1
    %730 = vsyncpa %s729, 1
    %731 = vsyncpa [#allocation6], 1
    %732 = vsyncpa [#allocation9], 1
    %733 = vsyncpa [#allocation4], 1
    %s734 = scalar_lea.sflag [#allocation4], 1
    %735 = vsyncpa %s734, 1

</llo_original>
